<compile_context>
chip_gen: v6e
topology: v6e:2x2x1
jax: 0.10.0
libtpu: 0.0.40
codegen_flags: <defaults>
</compile_context>

<pallas_src>
import jax
import jax.numpy as jnp
import numpy as np
from jax import lax
from jax.experimental import pallas as pl
from jax.experimental.pallas import tpu as pltpu

INF = 1000000000.0  # same finite "infinity" the PyTorch module uses


def _round_up(x, m):
    return ((x + m - 1) // m) * m


def _pick_tiling(n, desired_tb=1024):
    """Pick the lattice-batch (lane) tile.

    - pad only to the next multiple of 128 (no extra pad waste),
    - use tiles up to `desired_tb` lanes (amortises per-grid-step overhead),
    - keep >= 2 grid steps whenever the batch allows it so the "parallel"
      grid axis shards across both TensorCores on v7x (v5e/v6e unaffected).
    """
    bp = _round_up(max(int(n), 1), 128)
    cands = [t for t in range(128, bp + 1, 128) if bp % t == 0 and t <= desired_tb]
    if bp >= 256:
        multi = [t for t in cands if bp // t >= 2]
        if multi:
            cands = multi
    return max(cands), bp


# ----------------------------------------------------------------------------
# Pallas kernels: lattice forward algorithm (logsumexp alphas) [+ entropy].
# Layout: blocks of shape (L*M, TB), sublane index = i*M + m (i = lattice
# position, m = unit-length index), lane index = lattice id (batch-on-lanes).
# ----------------------------------------------------------------------------
def _make_lattice_kernel(L, M, full):
    # group consecutive columns so big loads/stores are 8-sublane aligned
    group = 8 // M if (M < 8 and 8 % M == 0) else 1

    def kernel(*refs):
        if full:
            pen_ref, len_ref, logz_ref, ent_ref, edge_ref, node_ref = refs
        else:
            pen_ref, len_ref, logz_ref, edge_ref = refs

        TB = pen_ref.shape[-1]
        lens = len_ref[...]                                # (1, TB) int32
        zero = jnp.zeros((1, TB), jnp.float32)

        logz = zero
        ent = zero
        # rolling carries: row m holds alpha / H of node (i - m); entries for
        # m > i stay at the initial zeros and contribute nothing because the
        # structural mask gates them (gate == 0 there).
        alpha_buf = jnp.zeros((M, TB), jnp.float32)
        h_buf = jnp.zeros((M, TB), jnp.float32)

        if full:
            node_ref[pl.ds(0, 1), :] = zero                # alpha[0] = 0

        def step(i, pen_col, alpha_buf, h_buf, logz, ent):
            # pen_col = ts + (ms - 1) * INF  (mask folded in on the host side)
            gate = (pen_col > -0.5 * INF).astype(jnp.float32)   # == ms[:, i]
            edge_col = pen_col + gate * alpha_buf               # edge_log_alpha col

            # single exp per step; p reused for both lse and q (review opt #1)
            cmax = jnp.max(edge_col, axis=0, keepdims=True)     # (1, TB)
            xm = edge_col - cmax
            p = jnp.exp(xm)
            s = jnp.sum(p, axis=0, keepdims=True)
            logs = jnp.log(s)
            lse = cmax + logs                                   # alpha[i+1]

            # NOTE: lanes with length == 0 (padding) or length > L keep 0 here,
            # matching the reference for length == 0.
            hit = lens == (i + 1)
            logz = jnp.where(hit, lse, logz)

            if full:
                q = p / s                                       # exact divide
                x = xm - logs                                   # edge_col - lse
                # forward entropy recursion: H[i+1] = sum_e q_e (H[src] - log q_e)
                h_next = jnp.sum(q * (gate * h_buf - x), axis=0, keepdims=True)
                ent = jnp.where(hit, h_next, ent)
                # node is small ((L+1) rows, forward batch only); per-row store
                # is fine relative to the 8-dense edge stores below.
                node_ref[pl.ds(i + 1, 1), :] = lse
                h_buf = jnp.concatenate([h_next, h_buf[:M - 1, :]], axis=0)

            # rolling sublane shift + insert (replaces the M-way select chain)
            alpha_buf = jnp.concatenate([lse, alpha_buf[:M - 1, :]], axis=0)
            return edge_col, alpha_buf, h_buf, logz, ent

        i = 0
        while i < L:                                        # static unroll over L
            g = min(group, L - i)
            pen_grp = pen_ref[pl.ds(i * M, g * M), :]       # aligned (8, TB) load
            cols = []
            for k in range(g):
                col, alpha_buf, h_buf, logz, ent = step(
                    i + k, pen_grp[k * M:(k + 1) * M, :], alpha_buf, h_buf, logz, ent)
                cols.append(col)
            edge_ref[pl.ds(i * M, g * M), :] = (
                cols[0] if g == 1 else jnp.concatenate(cols, axis=0))
            i += g

        logz_ref[...] = logz
        if full:
            ent_ref[...] = ent

    return kernel


def _run_lattice(pen_t, lengths, *, M, L, full, desired_tb=1024):
    """Run the lattice DP.

    pen_t  : (L*M, N) f32 kernel-layout potentials (= ts + (ms - 1) * INF).
    lengths: (N,) int lattice lengths.
    full=True  -> (log_alpha (1,Np), entropy (1,Np), edge (L*M,Np), node (L+1,Np))
    full=False -> (log_alpha (1,Np), edge (L*M,Np))
    """
    LM, N = pen_t.shape
    assert LM == L * M
    tb, Np = _pick_tiling(N, desired_tb)
    pen_p = jnp.pad(pen_t.astype(jnp.float32), ((0, 0), (0, Np - N)))
    len_p = jnp.pad(lengths.astype(jnp.int32), (0, Np - N)).reshape(1, Np)

    if full:
        out_shape = (
            jax.ShapeDtypeStruct((1, Np), jnp.float32),        # log_alpha
            jax.ShapeDtypeStruct((1, Np), jnp.float32),        # entropy
            jax.ShapeDtypeStruct((LM, Np), jnp.float32),       # edge_log_alpha
            jax.ShapeDtypeStruct((L + 1, Np), jnp.float32),    # node_log_alpha
        )
        out_specs = [
            pl.BlockSpec((1, tb), lambda b: (0, b)),
            pl.BlockSpec((1, tb), lambda b: (0, b)),
            pl.BlockSpec((LM, tb), lambda b: (0, b)),
            pl.BlockSpec((L + 1, tb), lambda b: (0, b)),
        ]
    else:
        out_shape = (
            jax.ShapeDtypeStruct((1, Np), jnp.float32),        # log_beta
            jax.ShapeDtypeStruct((LM, Np), jnp.float32),       # edge_log_beta
        )
        out_specs = [
            pl.BlockSpec((1, tb), lambda b: (0, b)),
            pl.BlockSpec((LM, tb), lambda b: (0, b)),
        ]

    # VMEM budget: double-buffered (LM, tb) f32 in + out blocks ~ 4*LM*tb*4 B;
    # at LM=32, tb=2048 that is ~1 MiB, far below even v7x's 64 MiB/TC cap.
    return pl.pallas_call(
        _make_lattice_kernel(L, M, full),
        out_shape=out_shape,
        grid_spec=pltpu.PrefetchScalarGridSpec(
            num_scalar_prefetch=0,
            grid=(Np // tb,),
            in_specs=[
                pl.BlockSpec((LM, tb), lambda b: (0, b)),
                pl.BlockSpec((1, tb), lambda b: (0, b)),
            ],
            out_specs=out_specs,
        ),
        compiler_params=pltpu.CompilerParams(
            dimension_semantics=("parallel",),
            vmem_limit_bytes=32 * 1024 * 1024,
        ),
    )(pen_p, len_p)


# ----------------------------------------------------------------------------
# Dense pure-JAX port of the reference forward_algorithm + entropy recursion
# (used only for the self-check in __main__).
# ----------------------------------------------------------------------------
def _lattice_reference(ts, ms, lengths):
    B, M, L = ts.shape
    msb = ms > 0.0
    m_iota = jnp.arange(M)[:, None]
    l_iota = jnp.arange(L)[None, :]
    npos = jnp.arange(L + 1)[None, :]

    edge = ts + jnp.where(msb, 0.0, -INF)
    edgeH = jnp.zeros((B, M, L), jnp.float32)
    node = jnp.where(npos == 0, 0.0, -INF) * jnp.ones((B, 1), jnp.float32)
    nodeH = jnp.zeros((B, L + 1), jnp.float32)

    for i in range(L):
        alpha_i = node[:, i]
        h_i = nodeH[:, i]
        diag = (l_iota - m_iota) == i
        maski = jnp.logical_and(diag[None], msb)
        edge = edge + jnp.where(maski, alpha_i[:, None, None], 0.0)
        edgeH = jnp.where(maski, h_i[:, None, None], edgeH)
        col = edge[:, :, i]
        colH = edgeH[:, :, i]
        cmax = jnp.max(col, axis=1, keepdims=True)
        lse = cmax[:, 0] + jnp.log(jnp.sum(jnp.exp(col - cmax), axis=1))
        x = col - lse[:, None]
        q = jnp.exp(x)
        h_next = jnp.sum(q * (colH - x), axis=1)
        node = node.at[:, i + 1].set(lse)
        nodeH = nodeH.at[:, i + 1].set(h_next)

    idx = lengths[:, None].astype(jnp.int32)
    logz = jnp.take_along_axis(node, idx, axis=1)[:, 0]
    ent = jnp.take_along_axis(nodeH, idx, axis=1)[:, 0]
    return logz, ent, edge, node


# ----------------------------------------------------------------------------
# Tokenizer wrapper (mixture_count=1, log_space_parametrization=False)
# ----------------------------------------------------------------------------
class TokenizerPallas:
    def __init__(self, vocab_size=32, pad_index=0, seed=0):
        self.pad_index = pad_index
        key = jax.random.PRNGKey(seed)
        log_w = 0.5 * jax.random.normal(key, (vocab_size,), dtype=jnp.float32)
        w = jnp.exp(log_w)                      # lsp=False -> stored in real space
        w = w.at[pad_index].set(1.0)            # reset_padding_weight()
        self.weights = w
        # log(weights) precomputed ONCE (removes per-id transcendental)
        self.log_weights = jnp.log(w)

    def get_weights(self, ids):
        # mixture_count == 1, lsp == False:  ts = log(weights[ids])
        return jnp.take(self.log_weights, ids.astype(jnp.int32), axis=0)

    def _pen_layout(self, ids, ms):
        """ids, ms: (N, M, L) -> penalised potentials in kernel layout (L*M, N).

        The gather is done directly in (L, M, N)-major order and the mask fold
        (ts + (ms - 1) * INF) fuses with it, so only ONE materialisation of
        the big float tensor feeds the pallas_call.
        """
        ids_t = jnp.transpose(ids.astype(jnp.int32), (2, 1, 0))   # (L, M, N)
        ms_t = jnp.transpose(ms.astype(jnp.float32), (2, 1, 0))
        ts_t = jnp.take(self.log_weights, ids_t, axis=0)
        pen_t = ts_t + (ms_t - 1.0) * INF
        L, M, N = pen_t.shape
        return pen_t.reshape(L * M, N)

    def forward(self, fwd_ids, fwd_ms, lengths, bwd_ids, bwd_ms, bwd_lengths,
                mmask, emask):
        num_batch, num_block = fwd_ids.shape[:2]
        fwd_ids = fwd_ids.reshape(-1, *fwd_ids.shape[2:])          # (B, M, L)
        fwd_ms = fwd_ms.reshape(-1, *fwd_ms.shape[2:])
        lengths = lengths.reshape(-1)
        bwd_ids = bwd_ids.reshape(-1, *bwd_ids.shape[2:])          # (B, L, M, L)
        bwd_ms = bwd_ms.reshape(-1, *bwd_ms.shape[2:])
        bwd_lengths = bwd_lengths.reshape(-1, *bwd_lengths.shape[2:])  # (B, L)
        emask0 = emask[0]                                          # (num_block, L, M, L)

        B, M, L = fwd_ids.shape

        # ---- forward lattices: full kernel (logZ, entropy, edges, nodes) ----
        fwd_pen = self._pen_layout(fwd_ids, fwd_ms)
        logz_f, ent_f, edge_f_t, node_f_t = _run_lattice(
            fwd_pen, lengths, M=M, L=L, full=True)
        log_alpha = logz_f[0, :B]
        ent_blocks = ent_f[0, :B]
        edge_log_alpha = jnp.transpose(edge_f_t[:, :B].reshape(L, M, B), (2, 1, 0))
        node_log_alpha = jnp.transpose(node_f_t[:, :B], (1, 0))

        # ---- backward lattices (B*L of them): slim kernel (logZ, edges) ----
        bwd_pen = self._pen_layout(bwd_ids.reshape(B * L, M, L),
                                   bwd_ms.reshape(B * L, M, L))
        logz_b, edge_b_t = _run_lattice(
            bwd_pen, bwd_lengths.reshape(-1), M=M, L=L, full=False)
        log_betas = logz_b[0, :B * L].reshape(B, L)

        # transpose-back + emask blend as one fused elementwise pass over the
        # largest output (no extra HBM round trip).  emask[0] is broadcast
        # over num_batch, which reproduces the reference when num_batch == 1
        # and generalises it safely otherwise.
        edge_log_betas = jnp.transpose(
            edge_b_t[:, :B * L].reshape(L, M, B, L), (2, 3, 1, 0))  # (B, L, M, L)
        edge_log_betas = edge_log_betas.reshape(num_batch, num_block, L, M, L)
        edge_log_betas = (edge_log_betas * emask0[None]
                          + (-INF) * (1.0 - emask0[None]))
        edge_log_betas = edge_log_betas.reshape(B, L, M, L)

        ent = ent_blocks.reshape(num_batch, num_block).sum(-1)     # per batch
        ent = jnp.maximum(ent, jnp.zeros_like(ent))                # clamp >= 0

        # TODO(synk): conditionals / tile / tile_lm (c, a, m outputs) and the
        # mixture_count > 1 branch come from mixins whose source is not
        # provided; they are intentionally not reproduced.
        return (ent, log_alpha, edge_log_alpha, node_log_alpha,
                log_betas, edge_log_betas)


if __name__ == "__main__":
    num_batch, num_block, M, L, V = 1, 8, 4, 8, 32
    key = jax.random.PRNGKey(0)
    k1, k2, k3 = jax.random.split(key, 3)

    tok = TokenizerPallas(vocab_size=V, pad_index=0, seed=0)

    fwd_ids = jax.random.randint(k1, (num_batch, num_block, M, L), 1, V,
                                 dtype=jnp.int32)
    bwd_ids = jax.random.randint(k2, (num_batch, num_block, L, M, L), 1, V,
                                 dtype=jnp.int32)
    lengths = jax.random.randint(k3, (num_batch, num_block), L - 2, L + 1,
                                 dtype=jnp.int32)

    m_ax = jnp.arange(M)[:, None]
    l_ax = jnp.arange(L)[None, :]
    struct = (m_ax <= l_ax)          # edge (m, l): unit of len m+1 ends at node l+1
    fwd_ms = (struct[None, None]
              & (l_ax[None, None] < lengths[..., None, None])).astype(jnp.float32)

    # backward lattice j covers the suffix starting at position j
    bwd_lengths = jnp.maximum(
        lengths[..., None] - jnp.arange(L)[None, None, :], 0).astype(jnp.int32)
    bwd_ms = (struct[None, None, None]
              & (l_ax[None, None, None] < bwd_lengths[..., None, None])
              ).astype(jnp.float32)

    mmask = jnp.ones((num_batch, num_block, L, M, L), jnp.float32)
    emask = (struct[None, None, None].astype(jnp.float32)
             * jnp.ones((num_batch, num_block, L, 1, 1), jnp.float32))

    fwd_fn = jax.jit(tok.forward)
    outs = jax.block_until_ready(
        fwd_fn(fwd_ids, fwd_ms, lengths, bwd_ids, bwd_ms, bwd_lengths,
               mmask, emask))

    # --- correctness self-check of both Pallas kernels vs the dense JAX port ---
    B = num_batch * num_block
    fwd_ids_f = fwd_ids.reshape(B, M, L)
    fwd_ms_f = fwd_ms.reshape(B, M, L)
    len_f = lengths.reshape(B)
    bwd_ids_f = bwd_ids.reshape(B * L, M, L)
    bwd_ms_f = bwd_ms.reshape(B * L, M, L)
    blen_f = bwd_lengths.reshape(B * L)

    # forward lattices (full kernel)
    k_logz, k_ent, k_edge_t, k_node_t = _run_lattice(
        tok._pen_layout(fwd_ids_f, fwd_ms_f), len_f, M=M, L=L, full=True)
    k_edge = jnp.transpose(k_edge_t[:, :B].reshape(L, M, B), (2, 1, 0))
    k_node = jnp.transpose(k_node_t[:, :B], (1, 0))
    r_logz, r_ent, r_edge, r_node = _lattice_reference(
        tok.get_weights(fwd_ids_f), fwd_ms_f, len_f)
    np.testing.assert_allclose(np.asarray(k_logz[0, :B]), np.asarray(r_logz),
                               rtol=1e-4, atol=1e-4)
    np.testing.assert_allclose(np.asarray(k_ent[0, :B]), np.asarray(r_ent),
                               rtol=1e-4, atol=1e-4)
    np.testing.assert_allclose(np.asarray(k_edge), np.asarray(r_edge),
                               rtol=1e-4, atol=1e-4)
    np.testing.assert_allclose(np.asarray(k_node), np.asarray(r_node),
                               rtol=1e-4, atol=1e-4)

    # backward lattices (slim kernel)
    kb_logz, kb_edge_t = _run_lattice(
        tok._pen_layout(bwd_ids_f, bwd_ms_f), blen_f, M=M, L=L, full=False)
    kb_edge = jnp.transpose(kb_edge_t[:, :B * L].reshape(L, M, B * L), (2, 1, 0))
    rb_logz, _, rb_edge, _ = _lattice_reference(
        tok.get_weights(bwd_ids_f), bwd_ms_f, blen_f)
    np.testing.assert_allclose(np.asarray(kb_logz[0, :B * L]), np.asarray(rb_logz),
                               rtol=1e-4, atol=1e-4)
    np.testing.assert_allclose(np.asarray(kb_edge), np.asarray(rb_edge),
                               rtol=1e-4, atol=1e-4)

    print("KERNEL_OK")
</pallas_src>

<mosaic_0001>
module attributes {stable_mosaic.version = 11 : i64} {
  func.func @kernel(%arg0: i32, %arg1: memref<32x128xf32, #tpu.memory_space<vmem>>, %arg2: memref<1x128xi32, #tpu.memory_space<vmem>>, %arg3: memref<1x128xf32, #tpu.memory_space<vmem>>, %arg4: memref<1x128xf32, #tpu.memory_space<vmem>>, %arg5: memref<32x128xf32, #tpu.memory_space<vmem>>, %arg6: memref<9x128xf32, #tpu.memory_space<vmem>>) attributes {dimension_semantics = [#tpu.dimension_semantics<parallel>], iteration_bounds = array<i64: 1>, scalar_prefetch = 0 : i64, scratch_operands = 0 : i64, tpu.core_type = #tpu.core_type<tc>, window_params = [{transform_indices = @transform_0, window_bounds = array<i64: 32, 128>}, {transform_indices = @transform_1, window_bounds = array<i64: 1, 128>}, {transform_indices = @transform_2, window_bounds = array<i64: 1, 128>}, {transform_indices = @transform_3, window_bounds = array<i64: 1, 128>}, {transform_indices = @transform_4, window_bounds = array<i64: 32, 128>}, {transform_indices = @transform_5, window_bounds = array<i64: 9, 128>}]} {
    %c0 = arith.constant 0 : index
    %c0_0 = arith.constant 0 : index
    %0 = vector.load %arg2[%c0, %c0_0] : memref<1x128xi32, #tpu.memory_space<vmem>>, vector<1x128xi32>
    %cst = arith.constant 0.000000e+00 : f32
    %1 = vector.broadcast %cst : f32 to vector<1x128xf32>
    %cst_1 = arith.constant 0.000000e+00 : f32
    %2 = vector.broadcast %cst_1 : f32 to vector<4x128xf32>
    %cst_2 = arith.constant 0.000000e+00 : f32
    %3 = vector.broadcast %cst_2 : f32 to vector<4x128xf32>
    %c0_3 = arith.constant 0 : index
    %c0_4 = arith.constant 0 : index
    %4 = vector.load %arg6[%c0_3, %c0_4] : memref<9x128xf32, #tpu.memory_space<vmem>>, vector<1x128xf32>
    tpu.vector_store %arg6[%c0_3, %c0_4], %1 {strides = array<i32>} : memref<9x128xf32, #tpu.memory_space<vmem>>, vector<1x128xf32>,
    %c0_5 = arith.constant 0 : index
    %c0_6 = arith.constant 0 : index
    %5 = vector.load %arg1[%c0_5, %c0_6] : memref<32x128xf32, #tpu.memory_space<vmem>>, vector<8x128xf32>
    %6 = vector.extract_strided_slice %5 {offsets = [0, 0], sizes = [4, 128], strides = [1, 1]} : vector<8x128xf32> to vector<4x128xf32>
    %cst_7 = arith.constant -5.000000e+08 : f32
    %7 = vector.broadcast %cst_7 : f32 to vector<4x128xf32>
    %8 = arith.cmpf ogt, %6, %7 : vector<4x128xf32>
    %9 = arith.extui %8 : vector<4x128xi1> to vector<4x128xi32>
    %10 = arith.sitofp %9 : vector<4x128xi32> to vector<4x128xf32>
    %11 = arith.mulf %10, %2 : vector<4x128xf32>
    %12 = arith.addf %6, %11 : vector<4x128xf32>
    %cst_8 = arith.constant dense<0xFF800000> : vector<128xf32>
    %13 = vector.multi_reduction <maximumf>, %12, %cst_8 [0] : vector<4x128xf32> to vector<128xf32>
    %14 = vector.shape_cast %13 : vector<128xf32> to vector<1x128xf32>
    %15 = vector.broadcast %14 : vector<1x128xf32> to vector<4x128xf32>
    %16 = arith.subf %12, %15 : vector<4x128xf32>
    %17 = math.exp %16 : vector<4x128xf32>
    %cst_9 = arith.constant dense<0.000000e+00> : vector<128xf32>
    %18 = vector.multi_reduction <add>, %17, %cst_9 [0] : vector<4x128xf32> to vector<128xf32>
    %19 = vector.shape_cast %18 : vector<128xf32> to vector<1x128xf32>
    %20 = math.log %19 : vector<1x128xf32>
    %21 = arith.addf %14, %20 : vector<1x128xf32>
    %c1_i32 = arith.constant 1 : i32
    %22 = vector.broadcast %c1_i32 : i32 to vector<1x128xi32>
    %23 = arith.cmpi eq, %0, %22 : vector<1x128xi32>
    %24 = arith.select %23, %21, %1 : vector<1x128xi1>, vector<1x128xf32>
    %25 = vector.broadcast %19 : vector<1x128xf32> to vector<4x128xf32>
    %26 = arith.divf %17, %25 : vector<4x128xf32>
    %27 = vector.broadcast %20 : vector<1x128xf32> to vector<4x128xf32>
    %28 = arith.subf %16, %27 : vector<4x128xf32>
    %29 = arith.mulf %10, %3 : vector<4x128xf32>
    %30 = arith.subf %29, %28 : vector<4x128xf32>
    %31 = arith.mulf %26, %30 : vector<4x128xf32>
    %cst_10 = arith.constant dense<0.000000e+00> : vector<128xf32>
    %32 = vector.multi_reduction <add>, %31, %cst_10 [0] : vector<4x128xf32> to vector<128xf32>
    %33 = vector.shape_cast %32 : vector<128xf32> to vector<1x128xf32>
    %34 = arith.select %23, %33, %1 : vector<1x128xi1>, vector<1x128xf32>
    %c1 = arith.constant 1 : index
    %c0_11 = arith.constant 0 : index
    %35 = vector.load %arg6[%c1, %c0_11] : memref<9x128xf32, #tpu.memory_space<vmem>>, vector<1x128xf32>
    tpu.vector_store %arg6[%c1, %c0_11], %21 {strides = array<i32>} : memref<9x128xf32, #tpu.memory_space<vmem>>, vector<1x128xf32>,
    %36 = vector.extract_strided_slice %3 {offsets = [0, 0], sizes = [3, 128], strides = [1, 1]} : vector<4x128xf32> to vector<3x128xf32>
    %37 = tpu.concatenate %33, %36 in 0 : vector<1x128xf32>, vector<3x128xf32> -> vector<4x128xf32>
    %38 = vector.extract_strided_slice %2 {offsets = [0, 0], sizes = [3, 128], strides = [1, 1]} : vector<4x128xf32> to vector<3x128xf32>
    %39 = tpu.concatenate %21, %38 in 0 : vector<1x128xf32>, vector<3x128xf32> -> vector<4x128xf32>
    %40 = vector.extract_strided_slice %5 {offsets = [4, 0], sizes = [4, 128], strides = [1, 1]} : vector<8x128xf32> to vector<4x128xf32>
    %cst_12 = arith.constant -5.000000e+08 : f32
    %41 = vector.broadcast %cst_12 : f32 to vector<4x128xf32>
    %42 = arith.cmpf ogt, %40, %41 : vector<4x128xf32>
    %43 = arith.extui %42 : vector<4x128xi1> to vector<4x128xi32>
    %44 = arith.sitofp %43 : vector<4x128xi32> to vector<4x128xf32>
    %45 = arith.mulf %44, %39 : vector<4x128xf32>
    %46 = arith.addf %40, %45 : vector<4x128xf32>
    %cst_13 = arith.constant dense<0xFF800000> : vector<128xf32>
    %47 = vector.multi_reduction <maximumf>, %46, %cst_13 [0] : vector<4x128xf32> to vector<128xf32>
    %48 = vector.shape_cast %47 : vector<128xf32> to vector<1x128xf32>
    %49 = vector.broadcast %48 : vector<1x128xf32> to vector<4x128xf32>
    %50 = arith.subf %46, %49 : vector<4x128xf32>
    %51 = math.exp %50 : vector<4x128xf32>
    %cst_14 = arith.constant dense<0.000000e+00> : vector<128xf32>
    %52 = vector.multi_reduction <add>, %51, %cst_14 [0] : vector<4x128xf32> to vector<128xf32>
    %53 = vector.shape_cast %52 : vector<128xf32> to vector<1x128xf32>
    %54 = math.log %53 : vector<1x128xf32>
    %55 = arith.addf %48, %54 : vector<1x128xf32>
    %c2_i32 = arith.constant 2 : i32
    %56 = vector.broadcast %c2_i32 : i32 to vector<1x128xi32>
    %57 = arith.cmpi eq, %0, %56 : vector<1x128xi32>
    %58 = arith.select %57, %55, %24 : vector<1x128xi1>, vector<1x128xf32>
    %59 = vector.broadcast %53 : vector<1x128xf32> to vector<4x128xf32>
    %60 = arith.divf %51, %59 : vector<4x128xf32>
    %61 = vector.broadcast %54 : vector<1x128xf32> to vector<4x128xf32>
    %62 = arith.subf %50, %61 : vector<4x128xf32>
    %63 = arith.mulf %44, %37 : vector<4x128xf32>
    %64 = arith.subf %63, %62 : vector<4x128xf32>
    %65 = arith.mulf %60, %64 : vector<4x128xf32>
    %cst_15 = arith.constant dense<0.000000e+00> : vector<128xf32>
    %66 = vector.multi_reduction <add>, %65, %cst_15 [0] : vector<4x128xf32> to vector<128xf32>
    %67 = vector.shape_cast %66 : vector<128xf32> to vector<1x128xf32>
    %68 = arith.select %57, %67, %34 : vector<1x128xi1>, vector<1x128xf32>
    %c2 = arith.constant 2 : index
    %c0_16 = arith.constant 0 : index
    %69 = vector.load %arg6[%c2, %c0_16] : memref<9x128xf32, #tpu.memory_space<vmem>>, vector<1x128xf32>
    tpu.vector_store %arg6[%c2, %c0_16], %55 {strides = array<i32>} : memref<9x128xf32, #tpu.memory_space<vmem>>, vector<1x128xf32>,
    %70 = vector.extract_strided_slice %37 {offsets = [0, 0], sizes = [3, 128], strides = [1, 1]} : vector<4x128xf32> to vector<3x128xf32>
    %71 = tpu.concatenate %67, %70 in 0 : vector<1x128xf32>, vector<3x128xf32> -> vector<4x128xf32>
    %72 = vector.extract_strided_slice %39 {offsets = [0, 0], sizes = [3, 128], strides = [1, 1]} : vector<4x128xf32> to vector<3x128xf32>
    %73 = tpu.concatenate %55, %72 in 0 : vector<1x128xf32>, vector<3x128xf32> -> vector<4x128xf32>
    %74 = tpu.concatenate %12, %46 in 0 : vector<4x128xf32>, vector<4x128xf32> -> vector<8x128xf32>
    %c0_17 = arith.constant 0 : index
    %c0_18 = arith.constant 0 : index
    %75 = vector.load %arg5[%c0_17, %c0_18] : memref<32x128xf32, #tpu.memory_space<vmem>>, vector<8x128xf32>
    tpu.vector_store %arg5[%c0_17, %c0_18], %74 {strides = array<i32>} : memref<32x128xf32, #tpu.memory_space<vmem>>, vector<8x128xf32>,
    %c8 = arith.constant 8 : index
    %c0_19 = arith.constant 0 : index
    %76 = vector.load %arg1[%c8, %c0_19] : memref<32x128xf32, #tpu.memory_space<vmem>>, vector<8x128xf32>
    %77 = vector.extract_strided_slice %76 {offsets = [0, 0], sizes = [4, 128], strides = [1, 1]} : vector<8x128xf32> to vector<4x128xf32>
    %cst_20 = arith.constant -5.000000e+08 : f32
    %78 = vector.broadcast %cst_20 : f32 to vector<4x128xf32>
    %79 = arith.cmpf ogt, %77, %78 : vector<4x128xf32>
    %80 = arith.extui %79 : vector<4x128xi1> to vector<4x128xi32>
    %81 = arith.sitofp %80 : vector<4x128xi32> to vector<4x128xf32>
    %82 = arith.mulf %81, %73 : vector<4x128xf32>
    %83 = arith.addf %77, %82 : vector<4x128xf32>
    %cst_21 = arith.constant dense<0xFF800000> : vector<128xf32>
    %84 = vector.multi_reduction <maximumf>, %83, %cst_21 [0] : vector<4x128xf32> to vector<128xf32>
    %85 = vector.shape_cast %84 : vector<128xf32> to vector<1x128xf32>
    %86 = vector.broadcast %85 : vector<1x128xf32> to vector<4x128xf32>
    %87 = arith.subf %83, %86 : vector<4x128xf32>
    %88 = math.exp %87 : vector<4x128xf32>
    %cst_22 = arith.constant dense<0.000000e+00> : vector<128xf32>
    %89 = vector.multi_reduction <add>, %88, %cst_22 [0] : vector<4x128xf32> to vector<128xf32>
    %90 = vector.shape_cast %89 : vector<128xf32> to vector<1x128xf32>
    %91 = math.log %90 : vector<1x128xf32>
    %92 = arith.addf %85, %91 : vector<1x128xf32>
    %c3_i32 = arith.constant 3 : i32
    %93 = vector.broadcast %c3_i32 : i32 to vector<1x128xi32>
    %94 = arith.cmpi eq, %0, %93 : vector<1x128xi32>
    %95 = arith.select %94, %92, %58 : vector<1x128xi1>, vector<1x128xf32>
    %96 = vector.broadcast %90 : vector<1x128xf32> to vector<4x128xf32>
    %97 = arith.divf %88, %96 : vector<4x128xf32>
    %98 = vector.broadcast %91 : vector<1x128xf32> to vector<4x128xf32>
    %99 = arith.subf %87, %98 : vector<4x128xf32>
    %100 = arith.mulf %81, %71 : vector<4x128xf32>
    %101 = arith.subf %100, %99 : vector<4x128xf32>
    %102 = arith.mulf %97, %101 : vector<4x128xf32>
    %cst_23 = arith.constant dense<0.000000e+00> : vector<128xf32>
    %103 = vector.multi_reduction <add>, %102, %cst_23 [0] : vector<4x128xf32> to vector<128xf32>
    %104 = vector.shape_cast %103 : vector<128xf32> to vector<1x128xf32>
    %105 = arith.select %94, %104, %68 : vector<1x128xi1>, vector<1x128xf32>
    %c3 = arith.constant 3 : index
    %c0_24 = arith.constant 0 : index
    %106 = vector.load %arg6[%c3, %c0_24] : memref<9x128xf32, #tpu.memory_space<vmem>>, vector<1x128xf32>
    tpu.vector_store %arg6[%c3, %c0_24], %92 {strides = array<i32>} : memref<9x128xf32, #tpu.memory_space<vmem>>, vector<1x128xf32>,
    %107 = vector.extract_strided_slice %71 {offsets = [0, 0], sizes = [3, 128], strides = [1, 1]} : vector<4x128xf32> to vector<3x128xf32>
    %108 = tpu.concatenate %104, %107 in 0 : vector<1x128xf32>, vector<3x128xf32> -> vector<4x128xf32>
    %109 = vector.extract_strided_slice %73 {offsets = [0, 0], sizes = [3, 128], strides = [1, 1]} : vector<4x128xf32> to vector<3x128xf32>
    %110 = tpu.concatenate %92, %109 in 0 : vector<1x128xf32>, vector<3x128xf32> -> vector<4x128xf32>
    %111 = vector.extract_strided_slice %76 {offsets = [4, 0], sizes = [4, 128], strides = [1, 1]} : vector<8x128xf32> to vector<4x128xf32>
    %cst_25 = arith.constant -5.000000e+08 : f32
    %112 = vector.broadcast %cst_25 : f32 to vector<4x128xf32>
    %113 = arith.cmpf ogt, %111, %112 : vector<4x128xf32>
    %114 = arith.extui %113 : vector<4x128xi1> to vector<4x128xi32>
    %115 = arith.sitofp %114 : vector<4x128xi32> to vector<4x128xf32>
    %116 = arith.mulf %115, %110 : vector<4x128xf32>
    %117 = arith.addf %111, %116 : vector<4x128xf32>
    %cst_26 = arith.constant dense<0xFF800000> : vector<128xf32>
    %118 = vector.multi_reduction <maximumf>, %117, %cst_26 [0] : vector<4x128xf32> to vector<128xf32>
    %119 = vector.shape_cast %118 : vector<128xf32> to vector<1x128xf32>
    %120 = vector.broadcast %119 : vector<1x128xf32> to vector<4x128xf32>
    %121 = arith.subf %117, %120 : vector<4x128xf32>
    %122 = math.exp %121 : vector<4x128xf32>
    %cst_27 = arith.constant dense<0.000000e+00> : vector<128xf32>
    %123 = vector.multi_reduction <add>, %122, %cst_27 [0] : vector<4x128xf32> to vector<128xf32>
    %124 = vector.shape_cast %123 : vector<128xf32> to vector<1x128xf32>
    %125 = math.log %124 : vector<1x128xf32>
    %126 = arith.addf %119, %125 : vector<1x128xf32>
    %c4_i32 = arith.constant 4 : i32
    %127 = vector.broadcast %c4_i32 : i32 to vector<1x128xi32>
    %128 = arith.cmpi eq, %0, %127 : vector<1x128xi32>
    %129 = arith.select %128, %126, %95 : vector<1x128xi1>, vector<1x128xf32>
    %130 = vector.broadcast %124 : vector<1x128xf32> to vector<4x128xf32>
    %131 = arith.divf %122, %130 : vector<4x128xf32>
    %132 = vector.broadcast %125 : vector<1x128xf32> to vector<4x128xf32>
    %133 = arith.subf %121, %132 : vector<4x128xf32>
    %134 = arith.mulf %115, %108 : vector<4x128xf32>
    %135 = arith.subf %134, %133 : vector<4x128xf32>
    %136 = arith.mulf %131, %135 : vector<4x128xf32>
    %cst_28 = arith.constant dense<0.000000e+00> : vector<128xf32>
    %137 = vector.multi_reduction <add>, %136, %cst_28 [0] : vector<4x128xf32> to vector<128xf32>
    %138 = vector.shape_cast %137 : vector<128xf32> to vector<1x128xf32>
    %139 = arith.select %128, %138, %105 : vector<1x128xi1>, vector<1x128xf32>
    %c4 = arith.constant 4 : index
    %c0_29 = arith.constant 0 : index
    %140 = vector.load %arg6[%c4, %c0_29] : memref<9x128xf32, #tpu.memory_space<vmem>>, vector<1x128xf32>
    tpu.vector_store %arg6[%c4, %c0_29], %126 {strides = array<i32>} : memref<9x128xf32, #tpu.memory_space<vmem>>, vector<1x128xf32>,
    %141 = vector.extract_strided_slice %108 {offsets = [0, 0], sizes = [3, 128], strides = [1, 1]} : vector<4x128xf32> to vector<3x128xf32>
    %142 = tpu.concatenate %138, %141 in 0 : vector<1x128xf32>, vector<3x128xf32> -> vector<4x128xf32>
    %143 = vector.extract_strided_slice %110 {offsets = [0, 0], sizes = [3, 128], strides = [1, 1]} : vector<4x128xf32> to vector<3x128xf32>
    %144 = tpu.concatenate %126, %143 in 0 : vector<1x128xf32>, vector<3x128xf32> -> vector<4x128xf32>
    %145 = tpu.concatenate %83, %117 in 0 : vector<4x128xf32>, vector<4x128xf32> -> vector<8x128xf32>
    %c8_30 = arith.constant 8 : index
    %c0_31 = arith.constant 0 : index
    %146 = vector.load %arg5[%c8_30, %c0_31] : memref<32x128xf32, #tpu.memory_space<vmem>>, vector<8x128xf32>
    tpu.vector_store %arg5[%c8_30, %c0_31], %145 {strides = array<i32>} : memref<32x128xf32, #tpu.memory_space<vmem>>, vector<8x128xf32>,
    %c16 = arith.constant 16 : index
    %c0_32 = arith.constant 0 : index
    %147 = vector.load %arg1[%c16, %c0_32] : memref<32x128xf32, #tpu.memory_space<vmem>>, vector<8x128xf32>
    %148 = vector.extract_strided_slice %147 {offsets = [0, 0], sizes = [4, 128], strides = [1, 1]} : vector<8x128xf32> to vector<4x128xf32>
    %cst_33 = arith.constant -5.000000e+08 : f32
    %149 = vector.broadcast %cst_33 : f32 to vector<4x128xf32>
    %150 = arith.cmpf ogt, %148, %149 : vector<4x128xf32>
    %151 = arith.extui %150 : vector<4x128xi1> to vector<4x128xi32>
    %152 = arith.sitofp %151 : vector<4x128xi32> to vector<4x128xf32>
    %153 = arith.mulf %152, %144 : vector<4x128xf32>
    %154 = arith.addf %148, %153 : vector<4x128xf32>
    %cst_34 = arith.constant dense<0xFF800000> : vector<128xf32>
    %155 = vector.multi_reduction <maximumf>, %154, %cst_34 [0] : vector<4x128xf32> to vector<128xf32>
    %156 = vector.shape_cast %155 : vector<128xf32> to vector<1x128xf32>
    %157 = vector.broadcast %156 : vector<1x128xf32> to vector<4x128xf32>
    %158 = arith.subf %154, %157 : vector<4x128xf32>
    %159 = math.exp %158 : vector<4x128xf32>
    %cst_35 = arith.constant dense<0.000000e+00> : vector<128xf32>
    %160 = vector.multi_reduction <add>, %159, %cst_35 [0] : vector<4x128xf32> to vector<128xf32>
    %161 = vector.shape_cast %160 : vector<128xf32> to vector<1x128xf32>
    %162 = math.log %161 : vector<1x128xf32>
    %163 = arith.addf %156, %162 : vector<1x128xf32>
    %c5_i32 = arith.constant 5 : i32
    %164 = vector.broadcast %c5_i32 : i32 to vector<1x128xi32>
    %165 = arith.cmpi eq, %0, %164 : vector<1x128xi32>
    %166 = arith.select %165, %163, %129 : vector<1x128xi1>, vector<1x128xf32>
    %167 = vector.broadcast %161 : vector<1x128xf32> to vector<4x128xf32>
    %168 = arith.divf %159, %167 : vector<4x128xf32>
    %169 = vector.broadcast %162 : vector<1x128xf32> to vector<4x128xf32>
    %170 = arith.subf %158, %169 : vector<4x128xf32>
    %171 = arith.mulf %152, %142 : vector<4x128xf32>
    %172 = arith.subf %171, %170 : vector<4x128xf32>
    %173 = arith.mulf %168, %172 : vector<4x128xf32>
    %cst_36 = arith.constant dense<0.000000e+00> : vector<128xf32>
    %174 = vector.multi_reduction <add>, %173, %cst_36 [0] : vector<4x128xf32> to vector<128xf32>
    %175 = vector.shape_cast %174 : vector<128xf32> to vector<1x128xf32>
    %176 = arith.select %165, %175, %139 : vector<1x128xi1>, vector<1x128xf32>
    %c5 = arith.constant 5 : index
    %c0_37 = arith.constant 0 : index
    %177 = vector.load %arg6[%c5, %c0_37] : memref<9x128xf32, #tpu.memory_space<vmem>>, vector<1x128xf32>
    tpu.vector_store %arg6[%c5, %c0_37], %163 {strides = array<i32>} : memref<9x128xf32, #tpu.memory_space<vmem>>, vector<1x128xf32>,
    %178 = vector.extract_strided_slice %142 {offsets = [0, 0], sizes = [3, 128], strides = [1, 1]} : vector<4x128xf32> to vector<3x128xf32>
    %179 = tpu.concatenate %175, %178 in 0 : vector<1x128xf32>, vector<3x128xf32> -> vector<4x128xf32>
    %180 = vector.extract_strided_slice %144 {offsets = [0, 0], sizes = [3, 128], strides = [1, 1]} : vector<4x128xf32> to vector<3x128xf32>
    %181 = tpu.concatenate %163, %180 in 0 : vector<1x128xf32>, vector<3x128xf32> -> vector<4x128xf32>
    %182 = vector.extract_strided_slice %147 {offsets = [4, 0], sizes = [4, 128], strides = [1, 1]} : vector<8x128xf32> to vector<4x128xf32>
    %cst_38 = arith.constant -5.000000e+08 : f32
    %183 = vector.broadcast %cst_38 : f32 to vector<4x128xf32>
    %184 = arith.cmpf ogt, %182, %183 : vector<4x128xf32>
    %185 = arith.extui %184 : vector<4x128xi1> to vector<4x128xi32>
    %186 = arith.sitofp %185 : vector<4x128xi32> to vector<4x128xf32>
    %187 = arith.mulf %186, %181 : vector<4x128xf32>
    %188 = arith.addf %182, %187 : vector<4x128xf32>
    %cst_39 = arith.constant dense<0xFF800000> : vector<128xf32>
    %189 = vector.multi_reduction <maximumf>, %188, %cst_39 [0] : vector<4x128xf32> to vector<128xf32>
    %190 = vector.shape_cast %189 : vector<128xf32> to vector<1x128xf32>
    %191 = vector.broadcast %190 : vector<1x128xf32> to vector<4x128xf32>
    %192 = arith.subf %188, %191 : vector<4x128xf32>
    %193 = math.exp %192 : vector<4x128xf32>
    %cst_40 = arith.constant dense<0.000000e+00> : vector<128xf32>
    %194 = vector.multi_reduction <add>, %193, %cst_40 [0] : vector<4x128xf32> to vector<128xf32>
    %195 = vector.shape_cast %194 : vector<128xf32> to vector<1x128xf32>
    %196 = math.log %195 : vector<1x128xf32>
    %197 = arith.addf %190, %196 : vector<1x128xf32>
    %c6_i32 = arith.constant 6 : i32
    %198 = vector.broadcast %c6_i32 : i32 to vector<1x128xi32>
    %199 = arith.cmpi eq, %0, %198 : vector<1x128xi32>
    %200 = arith.select %199, %197, %166 : vector<1x128xi1>, vector<1x128xf32>
    %201 = vector.broadcast %195 : vector<1x128xf32> to vector<4x128xf32>
    %202 = arith.divf %193, %201 : vector<4x128xf32>
    %203 = vector.broadcast %196 : vector<1x128xf32> to vector<4x128xf32>
    %204 = arith.subf %192, %203 : vector<4x128xf32>
    %205 = arith.mulf %186, %179 : vector<4x128xf32>
    %206 = arith.subf %205, %204 : vector<4x128xf32>
    %207 = arith.mulf %202, %206 : vector<4x128xf32>
    %cst_41 = arith.constant dense<0.000000e+00> : vector<128xf32>
    %208 = vector.multi_reduction <add>, %207, %cst_41 [0] : vector<4x128xf32> to vector<128xf32>
    %209 = vector.shape_cast %208 : vector<128xf32> to vector<1x128xf32>
    %210 = arith.select %199, %209, %176 : vector<1x128xi1>, vector<1x128xf32>
    %c6 = arith.constant 6 : index
    %c0_42 = arith.constant 0 : index
    %211 = vector.load %arg6[%c6, %c0_42] : memref<9x128xf32, #tpu.memory_space<vmem>>, vector<1x128xf32>
    tpu.vector_store %arg6[%c6, %c0_42], %197 {strides = array<i32>} : memref<9x128xf32, #tpu.memory_space<vmem>>, vector<1x128xf32>,
    %212 = vector.extract_strided_slice %179 {offsets = [0, 0], sizes = [3, 128], strides = [1, 1]} : vector<4x128xf32> to vector<3x128xf32>
    %213 = tpu.concatenate %209, %212 in 0 : vector<1x128xf32>, vector<3x128xf32> -> vector<4x128xf32>
    %214 = vector.extract_strided_slice %181 {offsets = [0, 0], sizes = [3, 128], strides = [1, 1]} : vector<4x128xf32> to vector<3x128xf32>
    %215 = tpu.concatenate %197, %214 in 0 : vector<1x128xf32>, vector<3x128xf32> -> vector<4x128xf32>
    %216 = tpu.concatenate %154, %188 in 0 : vector<4x128xf32>, vector<4x128xf32> -> vector<8x128xf32>
    %c16_43 = arith.constant 16 : index
    %c0_44 = arith.constant 0 : index
    %217 = vector.load %arg5[%c16_43, %c0_44] : memref<32x128xf32, #tpu.memory_space<vmem>>, vector<8x128xf32>
    tpu.vector_store %arg5[%c16_43, %c0_44], %216 {strides = array<i32>} : memref<32x128xf32, #tpu.memory_space<vmem>>, vector<8x128xf32>,
    %c24 = arith.constant 24 : index
    %c0_45 = arith.constant 0 : index
    %218 = vector.load %arg1[%c24, %c0_45] : memref<32x128xf32, #tpu.memory_space<vmem>>, vector<8x128xf32>
    %219 = vector.extract_strided_slice %218 {offsets = [0, 0], sizes = [4, 128], strides = [1, 1]} : vector<8x128xf32> to vector<4x128xf32>
    %cst_46 = arith.constant -5.000000e+08 : f32
    %220 = vector.broadcast %cst_46 : f32 to vector<4x128xf32>
    %221 = arith.cmpf ogt, %219, %220 : vector<4x128xf32>
    %222 = arith.extui %221 : vector<4x128xi1> to vector<4x128xi32>
    %223 = arith.sitofp %222 : vector<4x128xi32> to vector<4x128xf32>
    %224 = arith.mulf %223, %215 : vector<4x128xf32>
    %225 = arith.addf %219, %224 : vector<4x128xf32>
    %cst_47 = arith.constant dense<0xFF800000> : vector<128xf32>
    %226 = vector.multi_reduction <maximumf>, %225, %cst_47 [0] : vector<4x128xf32> to vector<128xf32>
    %227 = vector.shape_cast %226 : vector<128xf32> to vector<1x128xf32>
    %228 = vector.broadcast %227 : vector<1x128xf32> to vector<4x128xf32>
    %229 = arith.subf %225, %228 : vector<4x128xf32>
    %230 = math.exp %229 : vector<4x128xf32>
    %cst_48 = arith.constant dense<0.000000e+00> : vector<128xf32>
    %231 = vector.multi_reduction <add>, %230, %cst_48 [0] : vector<4x128xf32> to vector<128xf32>
    %232 = vector.shape_cast %231 : vector<128xf32> to vector<1x128xf32>
    %233 = math.log %232 : vector<1x128xf32>
    %234 = arith.addf %227, %233 : vector<1x128xf32>
    %c7_i32 = arith.constant 7 : i32
    %235 = vector.broadcast %c7_i32 : i32 to vector<1x128xi32>
    %236 = arith.cmpi eq, %0, %235 : vector<1x128xi32>
    %237 = arith.select %236, %234, %200 : vector<1x128xi1>, vector<1x128xf32>
    %238 = vector.broadcast %232 : vector<1x128xf32> to vector<4x128xf32>
    %239 = arith.divf %230, %238 : vector<4x128xf32>
    %240 = vector.broadcast %233 : vector<1x128xf32> to vector<4x128xf32>
    %241 = arith.subf %229, %240 : vector<4x128xf32>
    %242 = arith.mulf %223, %213 : vector<4x128xf32>
    %243 = arith.subf %242, %241 : vector<4x128xf32>
    %244 = arith.mulf %239, %243 : vector<4x128xf32>
    %cst_49 = arith.constant dense<0.000000e+00> : vector<128xf32>
    %245 = vector.multi_reduction <add>, %244, %cst_49 [0] : vector<4x128xf32> to vector<128xf32>
    %246 = vector.shape_cast %245 : vector<128xf32> to vector<1x128xf32>
    %247 = arith.select %236, %246, %210 : vector<1x128xi1>, vector<1x128xf32>
    %c7 = arith.constant 7 : index
    %c0_50 = arith.constant 0 : index
    %248 = vector.load %arg6[%c7, %c0_50] : memref<9x128xf32, #tpu.memory_space<vmem>>, vector<1x128xf32>
    tpu.vector_store %arg6[%c7, %c0_50], %234 {strides = array<i32>} : memref<9x128xf32, #tpu.memory_space<vmem>>, vector<1x128xf32>,
    %249 = vector.extract_strided_slice %213 {offsets = [0, 0], sizes = [3, 128], strides = [1, 1]} : vector<4x128xf32> to vector<3x128xf32>
    %250 = tpu.concatenate %246, %249 in 0 : vector<1x128xf32>, vector<3x128xf32> -> vector<4x128xf32>
    %251 = vector.extract_strided_slice %215 {offsets = [0, 0], sizes = [3, 128], strides = [1, 1]} : vector<4x128xf32> to vector<3x128xf32>
    %252 = tpu.concatenate %234, %251 in 0 : vector<1x128xf32>, vector<3x128xf32> -> vector<4x128xf32>
    %253 = vector.extract_strided_slice %218 {offsets = [4, 0], sizes = [4, 128], strides = [1, 1]} : vector<8x128xf32> to vector<4x128xf32>
    %cst_51 = arith.constant -5.000000e+08 : f32
    %254 = vector.broadcast %cst_51 : f32 to vector<4x128xf32>
    %255 = arith.cmpf ogt, %253, %254 : vector<4x128xf32>
    %256 = arith.extui %255 : vector<4x128xi1> to vector<4x128xi32>
    %257 = arith.sitofp %256 : vector<4x128xi32> to vector<4x128xf32>
    %258 = arith.mulf %257, %252 : vector<4x128xf32>
    %259 = arith.addf %253, %258 : vector<4x128xf32>
    %cst_52 = arith.constant dense<0xFF800000> : vector<128xf32>
    %260 = vector.multi_reduction <maximumf>, %259, %cst_52 [0] : vector<4x128xf32> to vector<128xf32>
    %261 = vector.shape_cast %260 : vector<128xf32> to vector<1x128xf32>
    %262 = vector.broadcast %261 : vector<1x128xf32> to vector<4x128xf32>
    %263 = arith.subf %259, %262 : vector<4x128xf32>
    %264 = math.exp %263 : vector<4x128xf32>
    %cst_53 = arith.constant dense<0.000000e+00> : vector<128xf32>
    %265 = vector.multi_reduction <add>, %264, %cst_53 [0] : vector<4x128xf32> to vector<128xf32>
    %266 = vector.shape_cast %265 : vector<128xf32> to vector<1x128xf32>
    %267 = math.log %266 : vector<1x128xf32>
    %268 = arith.addf %261, %267 : vector<1x128xf32>
    %c8_i32 = arith.constant 8 : i32
    %269 = vector.broadcast %c8_i32 : i32 to vector<1x128xi32>
    %270 = arith.cmpi eq, %0, %269 : vector<1x128xi32>
    %271 = arith.select %270, %268, %237 : vector<1x128xi1>, vector<1x128xf32>
    %272 = vector.broadcast %266 : vector<1x128xf32> to vector<4x128xf32>
    %273 = arith.divf %264, %272 : vector<4x128xf32>
    %274 = vector.broadcast %267 : vector<1x128xf32> to vector<4x128xf32>
    %275 = arith.subf %263, %274 : vector<4x128xf32>
    %276 = arith.mulf %257, %250 : vector<4x128xf32>
    %277 = arith.subf %276, %275 : vector<4x128xf32>
    %278 = arith.mulf %273, %277 : vector<4x128xf32>
    %cst_54 = arith.constant dense<0.000000e+00> : vector<128xf32>
    %279 = vector.multi_reduction <add>, %278, %cst_54 [0] : vector<4x128xf32> to vector<128xf32>
    %280 = vector.shape_cast %279 : vector<128xf32> to vector<1x128xf32>
    %281 = arith.select %270, %280, %247 : vector<1x128xi1>, vector<1x128xf32>
    %c8_55 = arith.constant 8 : index
    %c0_56 = arith.constant 0 : index
    %282 = vector.load %arg6[%c8_55, %c0_56] : memref<9x128xf32, #tpu.memory_space<vmem>>, vector<1x128xf32>
    tpu.vector_store %arg6[%c8_55, %c0_56], %268 {strides = array<i32>} : memref<9x128xf32, #tpu.memory_space<vmem>>, vector<1x128xf32>,
    %283 = tpu.concatenate %225, %259 in 0 : vector<4x128xf32>, vector<4x128xf32> -> vector<8x128xf32>
    %c24_57 = arith.constant 24 : index
    %c0_58 = arith.constant 0 : index
    %284 = vector.load %arg5[%c24_57, %c0_58] : memref<32x128xf32, #tpu.memory_space<vmem>>, vector<8x128xf32>
    tpu.vector_store %arg5[%c24_57, %c0_58], %283 {strides = array<i32>} : memref<32x128xf32, #tpu.memory_space<vmem>>, vector<8x128xf32>,
    %c0_59 = arith.constant 0 : index
    %c0_60 = arith.constant 0 : index
    %285 = vector.load %arg3[%c0_59, %c0_60] : memref<1x128xf32, #tpu.memory_space<vmem>>, vector<1x128xf32>
    tpu.vector_store %arg3[%c0_59, %c0_60], %271 {strides = array<i32>} : memref<1x128xf32, #tpu.memory_space<vmem>>, vector<1x128xf32>,
    %c0_61 = arith.constant 0 : index
    %c0_62 = arith.constant 0 : index
    %286 = vector.load %arg4[%c0_61, %c0_62] : memref<1x128xf32, #tpu.memory_space<vmem>>, vector<1x128xf32>
    tpu.vector_store %arg4[%c0_61, %c0_62], %281 {strides = array<i32>} : memref<1x128xf32, #tpu.memory_space<vmem>>, vector<1x128xf32>,
    return
  }
  func.func @transform_0(%arg0: i32) -> (i32, i32) {
    %c0_i32 = arith.constant 0 : i32
    %c0_i32_0 = arith.constant 0 : i32
    return %c0_i32, %arg0 : i32, i32
  }
  func.func @transform_1(%arg0: i32) -> (i32, i32) {
    %c0_i32 = arith.constant 0 : i32
    %c0_i32_0 = arith.constant 0 : i32
    return %c0_i32, %arg0 : i32, i32
  }
  func.func @transform_2(%arg0: i32) -> (i32, i32) {
    %c0_i32 = arith.constant 0 : i32
    %c0_i32_0 = arith.constant 0 : i32
    return %c0_i32, %arg0 : i32, i32
  }
  func.func @transform_3(%arg0: i32) -> (i32, i32) {
    %c0_i32 = arith.constant 0 : i32
    %c0_i32_0 = arith.constant 0 : i32
    return %c0_i32, %arg0 : i32, i32
  }
  func.func @transform_4(%arg0: i32) -> (i32, i32) {
    %c0_i32 = arith.constant 0 : i32
    %c0_i32_0 = arith.constant 0 : i32
    return %c0_i32, %arg0 : i32, i32
  }
  func.func @transform_5(%arg0: i32) -> (i32, i32) {
    %c0_i32 = arith.constant 0 : i32
    %c0_i32_0 = arith.constant 0 : i32
    return %c0_i32, %arg0 : i32, i32
  }
}

module attributes {stable_mosaic.version = 11 : i64} {
  func.func @kernel(%arg0: i32, %arg1: memref<32x128xf32, #tpu.memory_space<vmem>>, %arg2: memref<1x128xi32, #tpu.memory_space<vmem>>, %arg3: memref<1x128xf32, #tpu.memory_space<vmem>>, %arg4: memref<32x128xf32, #tpu.memory_space<vmem>>) attributes {dimension_semantics = [#tpu.dimension_semantics<parallel>], iteration_bounds = array<i64: 1>, scalar_prefetch = 0 : i64, scratch_operands = 0 : i64, tpu.core_type = #tpu.core_type<tc>, window_params = [{transform_indices = @transform_0, window_bounds = array<i64: 32, 128>}, {transform_indices = @transform_1, window_bounds = array<i64: 1, 128>}, {transform_indices = @transform_2, window_bounds = array<i64: 1, 128>}, {transform_indices = @transform_3, window_bounds = array<i64: 32, 128>}]} {
    %c0 = arith.constant 0 : index
    %c0_0 = arith.constant 0 : index
    %0 = vector.load %arg2[%c0, %c0_0] : memref<1x128xi32, #tpu.memory_space<vmem>>, vector<1x128xi32>
    %cst = arith.constant 0.000000e+00 : f32
    %1 = vector.broadcast %cst : f32 to vector<1x128xf32>
    %cst_1 = arith.constant 0.000000e+00 : f32
    %2 = vector.broadcast %cst_1 : f32 to vector<4x128xf32>
    %c0_2 = arith.constant 0 : index
    %c0_3 = arith.constant 0 : index
    %3 = vector.load %arg1[%c0_2, %c0_3] : memref<32x128xf32, #tpu.memory_space<vmem>>, vector<8x128xf32>
    %4 = vector.extract_strided_slice %3 {offsets = [0, 0], sizes = [4, 128], strides = [1, 1]} : vector<8x128xf32> to vector<4x128xf32>
    %cst_4 = arith.constant -5.000000e+08 : f32
    %5 = vector.broadcast %cst_4 : f32 to vector<4x128xf32>
    %6 = arith.cmpf ogt, %4, %5 : vector<4x128xf32>
    %7 = arith.extui %6 : vector<4x128xi1> to vector<4x128xi32>
    %8 = arith.sitofp %7 : vector<4x128xi32> to vector<4x128xf32>
    %9 = arith.mulf %8, %2 : vector<4x128xf32>
    %10 = arith.addf %4, %9 : vector<4x128xf32>
    %cst_5 = arith.constant dense<0xFF800000> : vector<128xf32>
    %11 = vector.multi_reduction <maximumf>, %10, %cst_5 [0] : vector<4x128xf32> to vector<128xf32>
    %12 = vector.shape_cast %11 : vector<128xf32> to vector<1x128xf32>
    %13 = vector.broadcast %12 : vector<1x128xf32> to vector<4x128xf32>
    %14 = arith.subf %10, %13 : vector<4x128xf32>
    %15 = math.exp %14 : vector<4x128xf32>
    %cst_6 = arith.constant dense<0.000000e+00> : vector<128xf32>
    %16 = vector.multi_reduction <add>, %15, %cst_6 [0] : vector<4x128xf32> to vector<128xf32>
    %17 = vector.shape_cast %16 : vector<128xf32> to vector<1x128xf32>
    %18 = math.log %17 : vector<1x128xf32>
    %19 = arith.addf %12, %18 : vector<1x128xf32>
    %c1_i32 = arith.constant 1 : i32
    %20 = vector.broadcast %c1_i32 : i32 to vector<1x128xi32>
    %21 = arith.cmpi eq, %0, %20 : vector<1x128xi32>
    %22 = arith.select %21, %19, %1 : vector<1x128xi1>, vector<1x128xf32>
    %23 = vector.extract_strided_slice %2 {offsets = [0, 0], sizes = [3, 128], strides = [1, 1]} : vector<4x128xf32> to vector<3x128xf32>
    %24 = tpu.concatenate %19, %23 in 0 : vector<1x128xf32>, vector<3x128xf32> -> vector<4x128xf32>
    %25 = vector.extract_strided_slice %3 {offsets = [4, 0], sizes = [4, 128], strides = [1, 1]} : vector<8x128xf32> to vector<4x128xf32>
    %cst_7 = arith.constant -5.000000e+08 : f32
    %26 = vector.broadcast %cst_7 : f32 to vector<4x128xf32>
    %27 = arith.cmpf ogt, %25, %26 : vector<4x128xf32>
    %28 = arith.extui %27 : vector<4x128xi1> to vector<4x128xi32>
    %29 = arith.sitofp %28 : vector<4x128xi32> to vector<4x128xf32>
    %30 = arith.mulf %29, %24 : vector<4x128xf32>
    %31 = arith.addf %25, %30 : vector<4x128xf32>
    %cst_8 = arith.constant dense<0xFF800000> : vector<128xf32>
    %32 = vector.multi_reduction <maximumf>, %31, %cst_8 [0] : vector<4x128xf32> to vector<128xf32>
    %33 = vector.shape_cast %32 : vector<128xf32> to vector<1x128xf32>
    %34 = vector.broadcast %33 : vector<1x128xf32> to vector<4x128xf32>
    %35 = arith.subf %31, %34 : vector<4x128xf32>
    %36 = math.exp %35 : vector<4x128xf32>
    %cst_9 = arith.constant dense<0.000000e+00> : vector<128xf32>
    %37 = vector.multi_reduction <add>, %36, %cst_9 [0] : vector<4x128xf32> to vector<128xf32>
    %38 = vector.shape_cast %37 : vector<128xf32> to vector<1x128xf32>
    %39 = math.log %38 : vector<1x128xf32>
    %40 = arith.addf %33, %39 : vector<1x128xf32>
    %c2_i32 = arith.constant 2 : i32
    %41 = vector.broadcast %c2_i32 : i32 to vector<1x128xi32>
    %42 = arith.cmpi eq, %0, %41 : vector<1x128xi32>
    %43 = arith.select %42, %40, %22 : vector<1x128xi1>, vector<1x128xf32>
    %44 = vector.extract_strided_slice %24 {offsets = [0, 0], sizes = [3, 128], strides = [1, 1]} : vector<4x128xf32> to vector<3x128xf32>
    %45 = tpu.concatenate %40, %44 in 0 : vector<1x128xf32>, vector<3x128xf32> -> vector<4x128xf32>
    %46 = tpu.concatenate %10, %31 in 0 : vector<4x128xf32>, vector<4x128xf32> -> vector<8x128xf32>
    %c0_10 = arith.constant 0 : index
    %c0_11 = arith.constant 0 : index
    %47 = vector.load %arg4[%c0_10, %c0_11] : memref<32x128xf32, #tpu.memory_space<vmem>>, vector<8x128xf32>
    tpu.vector_store %arg4[%c0_10, %c0_11], %46 {strides = array<i32>} : memref<32x128xf32, #tpu.memory_space<vmem>>, vector<8x128xf32>,
    %c8 = arith.constant 8 : index
    %c0_12 = arith.constant 0 : index
    %48 = vector.load %arg1[%c8, %c0_12] : memref<32x128xf32, #tpu.memory_space<vmem>>, vector<8x128xf32>
    %49 = vector.extract_strided_slice %48 {offsets = [0, 0], sizes = [4, 128], strides = [1, 1]} : vector<8x128xf32> to vector<4x128xf32>
    %cst_13 = arith.constant -5.000000e+08 : f32
    %50 = vector.broadcast %cst_13 : f32 to vector<4x128xf32>
    %51 = arith.cmpf ogt, %49, %50 : vector<4x128xf32>
    %52 = arith.extui %51 : vector<4x128xi1> to vector<4x128xi32>
    %53 = arith.sitofp %52 : vector<4x128xi32> to vector<4x128xf32>
    %54 = arith.mulf %53, %45 : vector<4x128xf32>
    %55 = arith.addf %49, %54 : vector<4x128xf32>
    %cst_14 = arith.constant dense<0xFF800000> : vector<128xf32>
    %56 = vector.multi_reduction <maximumf>, %55, %cst_14 [0] : vector<4x128xf32> to vector<128xf32>
    %57 = vector.shape_cast %56 : vector<128xf32> to vector<1x128xf32>
    %58 = vector.broadcast %57 : vector<1x128xf32> to vector<4x128xf32>
    %59 = arith.subf %55, %58 : vector<4x128xf32>
    %60 = math.exp %59 : vector<4x128xf32>
    %cst_15 = arith.constant dense<0.000000e+00> : vector<128xf32>
    %61 = vector.multi_reduction <add>, %60, %cst_15 [0] : vector<4x128xf32> to vector<128xf32>
    %62 = vector.shape_cast %61 : vector<128xf32> to vector<1x128xf32>
    %63 = math.log %62 : vector<1x128xf32>
    %64 = arith.addf %57, %63 : vector<1x128xf32>
    %c3_i32 = arith.constant 3 : i32
    %65 = vector.broadcast %c3_i32 : i32 to vector<1x128xi32>
    %66 = arith.cmpi eq, %0, %65 : vector<1x128xi32>
    %67 = arith.select %66, %64, %43 : vector<1x128xi1>, vector<1x128xf32>
    %68 = vector.extract_strided_slice %45 {offsets = [0, 0], sizes = [3, 128], strides = [1, 1]} : vector<4x128xf32> to vector<3x128xf32>
    %69 = tpu.concatenate %64, %68 in 0 : vector<1x128xf32>, vector<3x128xf32> -> vector<4x128xf32>
    %70 = vector.extract_strided_slice %48 {offsets = [4, 0], sizes = [4, 128], strides = [1, 1]} : vector<8x128xf32> to vector<4x128xf32>
    %cst_16 = arith.constant -5.000000e+08 : f32
    %71 = vector.broadcast %cst_16 : f32 to vector<4x128xf32>
    %72 = arith.cmpf ogt, %70, %71 : vector<4x128xf32>
    %73 = arith.extui %72 : vector<4x128xi1> to vector<4x128xi32>
    %74 = arith.sitofp %73 : vector<4x128xi32> to vector<4x128xf32>
    %75 = arith.mulf %74, %69 : vector<4x128xf32>
    %76 = arith.addf %70, %75 : vector<4x128xf32>
    %cst_17 = arith.constant dense<0xFF800000> : vector<128xf32>
    %77 = vector.multi_reduction <maximumf>, %76, %cst_17 [0] : vector<4x128xf32> to vector<128xf32>
    %78 = vector.shape_cast %77 : vector<128xf32> to vector<1x128xf32>
    %79 = vector.broadcast %78 : vector<1x128xf32> to vector<4x128xf32>
    %80 = arith.subf %76, %79 : vector<4x128xf32>
    %81 = math.exp %80 : vector<4x128xf32>
    %cst_18 = arith.constant dense<0.000000e+00> : vector<128xf32>
    %82 = vector.multi_reduction <add>, %81, %cst_18 [0] : vector<4x128xf32> to vector<128xf32>
    %83 = vector.shape_cast %82 : vector<128xf32> to vector<1x128xf32>
    %84 = math.log %83 : vector<1x128xf32>
    %85 = arith.addf %78, %84 : vector<1x128xf32>
    %c4_i32 = arith.constant 4 : i32
    %86 = vector.broadcast %c4_i32 : i32 to vector<1x128xi32>
    %87 = arith.cmpi eq, %0, %86 : vector<1x128xi32>
    %88 = arith.select %87, %85, %67 : vector<1x128xi1>, vector<1x128xf32>
    %89 = vector.extract_strided_slice %69 {offsets = [0, 0], sizes = [3, 128], strides = [1, 1]} : vector<4x128xf32> to vector<3x128xf32>
    %90 = tpu.concatenate %85, %89 in 0 : vector<1x128xf32>, vector<3x128xf32> -> vector<4x128xf32>
    %91 = tpu.concatenate %55, %76 in 0 : vector<4x128xf32>, vector<4x128xf32> -> vector<8x128xf32>
    %c8_19 = arith.constant 8 : index
    %c0_20 = arith.constant 0 : index
    %92 = vector.load %arg4[%c8_19, %c0_20] : memref<32x128xf32, #tpu.memory_space<vmem>>, vector<8x128xf32>
    tpu.vector_store %arg4[%c8_19, %c0_20], %91 {strides = array<i32>} : memref<32x128xf32, #tpu.memory_space<vmem>>, vector<8x128xf32>,
    %c16 = arith.constant 16 : index
    %c0_21 = arith.constant 0 : index
    %93 = vector.load %arg1[%c16, %c0_21] : memref<32x128xf32, #tpu.memory_space<vmem>>, vector<8x128xf32>
    %94 = vector.extract_strided_slice %93 {offsets = [0, 0], sizes = [4, 128], strides = [1, 1]} : vector<8x128xf32> to vector<4x128xf32>
    %cst_22 = arith.constant -5.000000e+08 : f32
    %95 = vector.broadcast %cst_22 : f32 to vector<4x128xf32>
    %96 = arith.cmpf ogt, %94, %95 : vector<4x128xf32>
    %97 = arith.extui %96 : vector<4x128xi1> to vector<4x128xi32>
    %98 = arith.sitofp %97 : vector<4x128xi32> to vector<4x128xf32>
    %99 = arith.mulf %98, %90 : vector<4x128xf32>
    %100 = arith.addf %94, %99 : vector<4x128xf32>
    %cst_23 = arith.constant dense<0xFF800000> : vector<128xf32>
    %101 = vector.multi_reduction <maximumf>, %100, %cst_23 [0] : vector<4x128xf32> to vector<128xf32>
    %102 = vector.shape_cast %101 : vector<128xf32> to vector<1x128xf32>
    %103 = vector.broadcast %102 : vector<1x128xf32> to vector<4x128xf32>
    %104 = arith.subf %100, %103 : vector<4x128xf32>
    %105 = math.exp %104 : vector<4x128xf32>
    %cst_24 = arith.constant dense<0.000000e+00> : vector<128xf32>
    %106 = vector.multi_reduction <add>, %105, %cst_24 [0] : vector<4x128xf32> to vector<128xf32>
    %107 = vector.shape_cast %106 : vector<128xf32> to vector<1x128xf32>
    %108 = math.log %107 : vector<1x128xf32>
    %109 = arith.addf %102, %108 : vector<1x128xf32>
    %c5_i32 = arith.constant 5 : i32
    %110 = vector.broadcast %c5_i32 : i32 to vector<1x128xi32>
    %111 = arith.cmpi eq, %0, %110 : vector<1x128xi32>
    %112 = arith.select %111, %109, %88 : vector<1x128xi1>, vector<1x128xf32>
    %113 = vector.extract_strided_slice %90 {offsets = [0, 0], sizes = [3, 128], strides = [1, 1]} : vector<4x128xf32> to vector<3x128xf32>
    %114 = tpu.concatenate %109, %113 in 0 : vector<1x128xf32>, vector<3x128xf32> -> vector<4x128xf32>
    %115 = vector.extract_strided_slice %93 {offsets = [4, 0], sizes = [4, 128], strides = [1, 1]} : vector<8x128xf32> to vector<4x128xf32>
    %cst_25 = arith.constant -5.000000e+08 : f32
    %116 = vector.broadcast %cst_25 : f32 to vector<4x128xf32>
    %117 = arith.cmpf ogt, %115, %116 : vector<4x128xf32>
    %118 = arith.extui %117 : vector<4x128xi1> to vector<4x128xi32>
    %119 = arith.sitofp %118 : vector<4x128xi32> to vector<4x128xf32>
    %120 = arith.mulf %119, %114 : vector<4x128xf32>
    %121 = arith.addf %115, %120 : vector<4x128xf32>
    %cst_26 = arith.constant dense<0xFF800000> : vector<128xf32>
    %122 = vector.multi_reduction <maximumf>, %121, %cst_26 [0] : vector<4x128xf32> to vector<128xf32>
    %123 = vector.shape_cast %122 : vector<128xf32> to vector<1x128xf32>
    %124 = vector.broadcast %123 : vector<1x128xf32> to vector<4x128xf32>
    %125 = arith.subf %121, %124 : vector<4x128xf32>
    %126 = math.exp %125 : vector<4x128xf32>
    %cst_27 = arith.constant dense<0.000000e+00> : vector<128xf32>
    %127 = vector.multi_reduction <add>, %126, %cst_27 [0] : vector<4x128xf32> to vector<128xf32>
    %128 = vector.shape_cast %127 : vector<128xf32> to vector<1x128xf32>
    %129 = math.log %128 : vector<1x128xf32>
    %130 = arith.addf %123, %129 : vector<1x128xf32>
    %c6_i32 = arith.constant 6 : i32
    %131 = vector.broadcast %c6_i32 : i32 to vector<1x128xi32>
    %132 = arith.cmpi eq, %0, %131 : vector<1x128xi32>
    %133 = arith.select %132, %130, %112 : vector<1x128xi1>, vector<1x128xf32>
    %134 = vector.extract_strided_slice %114 {offsets = [0, 0], sizes = [3, 128], strides = [1, 1]} : vector<4x128xf32> to vector<3x128xf32>
    %135 = tpu.concatenate %130, %134 in 0 : vector<1x128xf32>, vector<3x128xf32> -> vector<4x128xf32>
    %136 = tpu.concatenate %100, %121 in 0 : vector<4x128xf32>, vector<4x128xf32> -> vector<8x128xf32>
    %c16_28 = arith.constant 16 : index
    %c0_29 = arith.constant 0 : index
    %137 = vector.load %arg4[%c16_28, %c0_29] : memref<32x128xf32, #tpu.memory_space<vmem>>, vector<8x128xf32>
    tpu.vector_store %arg4[%c16_28, %c0_29], %136 {strides = array<i32>} : memref<32x128xf32, #tpu.memory_space<vmem>>, vector<8x128xf32>,
    %c24 = arith.constant 24 : index
    %c0_30 = arith.constant 0 : index
    %138 = vector.load %arg1[%c24, %c0_30] : memref<32x128xf32, #tpu.memory_space<vmem>>, vector<8x128xf32>
    %139 = vector.extract_strided_slice %138 {offsets = [0, 0], sizes = [4, 128], strides = [1, 1]} : vector<8x128xf32> to vector<4x128xf32>
    %cst_31 = arith.constant -5.000000e+08 : f32
    %140 = vector.broadcast %cst_31 : f32 to vector<4x128xf32>
    %141 = arith.cmpf ogt, %139, %140 : vector<4x128xf32>
    %142 = arith.extui %141 : vector<4x128xi1> to vector<4x128xi32>
    %143 = arith.sitofp %142 : vector<4x128xi32> to vector<4x128xf32>
    %144 = arith.mulf %143, %135 : vector<4x128xf32>
    %145 = arith.addf %139, %144 : vector<4x128xf32>
    %cst_32 = arith.constant dense<0xFF800000> : vector<128xf32>
    %146 = vector.multi_reduction <maximumf>, %145, %cst_32 [0] : vector<4x128xf32> to vector<128xf32>
    %147 = vector.shape_cast %146 : vector<128xf32> to vector<1x128xf32>
    %148 = vector.broadcast %147 : vector<1x128xf32> to vector<4x128xf32>
    %149 = arith.subf %145, %148 : vector<4x128xf32>
    %150 = math.exp %149 : vector<4x128xf32>
    %cst_33 = arith.constant dense<0.000000e+00> : vector<128xf32>
    %151 = vector.multi_reduction <add>, %150, %cst_33 [0] : vector<4x128xf32> to vector<128xf32>
    %152 = vector.shape_cast %151 : vector<128xf32> to vector<1x128xf32>
    %153 = math.log %152 : vector<1x128xf32>
    %154 = arith.addf %147, %153 : vector<1x128xf32>
    %c7_i32 = arith.constant 7 : i32
    %155 = vector.broadcast %c7_i32 : i32 to vector<1x128xi32>
    %156 = arith.cmpi eq, %0, %155 : vector<1x128xi32>
    %157 = arith.select %156, %154, %133 : vector<1x128xi1>, vector<1x128xf32>
    %158 = vector.extract_strided_slice %135 {offsets = [0, 0], sizes = [3, 128], strides = [1, 1]} : vector<4x128xf32> to vector<3x128xf32>
    %159 = tpu.concatenate %154, %158 in 0 : vector<1x128xf32>, vector<3x128xf32> -> vector<4x128xf32>
    %160 = vector.extract_strided_slice %138 {offsets = [4, 0], sizes = [4, 128], strides = [1, 1]} : vector<8x128xf32> to vector<4x128xf32>
    %cst_34 = arith.constant -5.000000e+08 : f32
    %161 = vector.broadcast %cst_34 : f32 to vector<4x128xf32>
    %162 = arith.cmpf ogt, %160, %161 : vector<4x128xf32>
    %163 = arith.extui %162 : vector<4x128xi1> to vector<4x128xi32>
    %164 = arith.sitofp %163 : vector<4x128xi32> to vector<4x128xf32>
    %165 = arith.mulf %164, %159 : vector<4x128xf32>
    %166 = arith.addf %160, %165 : vector<4x128xf32>
    %cst_35 = arith.constant dense<0xFF800000> : vector<128xf32>
    %167 = vector.multi_reduction <maximumf>, %166, %cst_35 [0] : vector<4x128xf32> to vector<128xf32>
    %168 = vector.shape_cast %167 : vector<128xf32> to vector<1x128xf32>
    %169 = vector.broadcast %168 : vector<1x128xf32> to vector<4x128xf32>
    %170 = arith.subf %166, %169 : vector<4x128xf32>
    %171 = math.exp %170 : vector<4x128xf32>
    %cst_36 = arith.constant dense<0.000000e+00> : vector<128xf32>
    %172 = vector.multi_reduction <add>, %171, %cst_36 [0] : vector<4x128xf32> to vector<128xf32>
    %173 = vector.shape_cast %172 : vector<128xf32> to vector<1x128xf32>
    %174 = math.log %173 : vector<1x128xf32>
    %175 = arith.addf %168, %174 : vector<1x128xf32>
    %c8_i32 = arith.constant 8 : i32
    %176 = vector.broadcast %c8_i32 : i32 to vector<1x128xi32>
    %177 = arith.cmpi eq, %0, %176 : vector<1x128xi32>
    %178 = arith.select %177, %175, %157 : vector<1x128xi1>, vector<1x128xf32>
    %179 = tpu.concatenate %145, %166 in 0 : vector<4x128xf32>, vector<4x128xf32> -> vector<8x128xf32>
    %c24_37 = arith.constant 24 : index
    %c0_38 = arith.constant 0 : index
    %180 = vector.load %arg4[%c24_37, %c0_38] : memref<32x128xf32, #tpu.memory_space<vmem>>, vector<8x128xf32>
    tpu.vector_store %arg4[%c24_37, %c0_38], %179 {strides = array<i32>} : memref<32x128xf32, #tpu.memory_space<vmem>>, vector<8x128xf32>,
    %c0_39 = arith.constant 0 : index
    %c0_40 = arith.constant 0 : index
    %181 = vector.load %arg3[%c0_39, %c0_40] : memref<1x128xf32, #tpu.memory_space<vmem>>, vector<1x128xf32>
    tpu.vector_store %arg3[%c0_39, %c0_40], %178 {strides = array<i32>} : memref<1x128xf32, #tpu.memory_space<vmem>>, vector<1x128xf32>,
    return
  }
  func.func @transform_0(%arg0: i32) -> (i32, i32) {
    %c0_i32 = arith.constant 0 : i32
    %c0_i32_0 = arith.constant 0 : i32
    return %c0_i32, %arg0 : i32, i32
  }
  func.func @transform_1(%arg0: i32) -> (i32, i32) {
    %c0_i32 = arith.constant 0 : i32
    %c0_i32_0 = arith.constant 0 : i32
    return %c0_i32, %arg0 : i32, i32
  }
  func.func @transform_2(%arg0: i32) -> (i32, i32) {
    %c0_i32 = arith.constant 0 : i32
    %c0_i32_0 = arith.constant 0 : i32
    return %c0_i32, %arg0 : i32, i32
  }
  func.func @transform_3(%arg0: i32) -> (i32, i32) {
    %c0_i32 = arith.constant 0 : i32
    %c0_i32_0 = arith.constant 0 : i32
    return %c0_i32, %arg0 : i32, i32
  }
}

</mosaic_0001>

<llo_original>
// kernel: forward.2
$region0: #{forward.2}
  #allocation0 [shape = 'u32[]', space=smem, size = 0x4, offset = 0x4, fixed_abs, tag = 'smem constant byte address 0x4 - core index']
  #allocation1 [shape = 'u32[144,128]{1,0:T(1,128)}', space=vmem, size = 0x12000, scoped, tag = 'internal scratch']
  %s0 = inlined_call_operand.vmem [shape: f32[32,128], index: 0, kind: input, shape index: {}]
  %s1 = inlined_call_operand.vmem [shape: s32[1,128], index: 1, kind: input, shape index: {}]
  %s2 = inlined_call_operand.vmem [shape: f32[1,128], index: 2, kind: output, shape index: {0}]
  %s3 = inlined_call_operand.vmem [shape: f32[1,128], index: 3, kind: output, shape index: {1}]
  %s4 = inlined_call_operand.vmem [shape: f32[32,128], index: 4, kind: output, shape index: {2}]
  %s5 = inlined_call_operand.vmem [shape: f32[9,128], index: 5, kind: output, shape index: {3}]
  %6 = xla_tuple %s2, %s3, %s4, %s5
  %s7 = sld [smem:[#allocation0]]
  $region42: #{forward.2} parent=0
    _
  %s9 = ssub.s32 1, %s7
  %s10 = scalar_select 0, %s9, %s7
  // Predicated region
  $region2: #{forward.2} parent=0 // pred_check
    _
  $region3: #{forward.2} parent=0 // pred_check_branch
    %12 = sbr.rel (0) target = $region5
  $region4: #{forward.2} parent=0 // pred_region
    _
  $region5: #{forward.2} parent=0 // pred_fallthru
    _
  // Predicated region
  $region6: #{forward.2} parent=0 // pred_check
    _
  $region7: #{forward.2} parent=0 // pred_check_branch
    %14 = sbr.rel (0) target = $region9
  $region8: #{forward.2} parent=0 // pred_region
    _
  $region9: #{forward.2} parent=0 // pred_fallthru
    _
  %v15 = vld [vmem:[%s1] sm:$0x1]
  %16 = vst [vmem:[%s5] sm:$0x1] 0.0
  %v17 = vld [vmem:[%s0] sm:$0xff]
  %vm18 = vcmp.gt.f32.partialorder %v17, -5e+08
  %v19 = vsel %vm18, 1, 0
  %v20 = vcvt.s32.f32 %v19
  %v21 = vmul.f32 %v20, 0.0
  %v22 = vadd.f32 %v17, %v21
  %vm23 = vcmask 1043456
  %v24 = vsel %vm23, %v22, -inf
  %v25 = vrot.slane %v24, 4
  %v26 = vmax.f32 %v24, %v25
  %v27 = vrot.slane %v26, 2
  %v28 = vmax.f32 %v26, %v27
  %v29 = vrot.slane %v28, 1
  %v30 = vmax.f32 %v28, %v29
  %v31 = vsub.f32 %v22, %v30
  %v32 = vmul.f32 %v31, 1.442695
  %v33 = vpow.pop %v32
  %v34 = vsel %vm23, %v33, 0.0
  %v35 = vrot.slane %v34, 4
  %v36 = vadd.f32 %v34, %v35
  %v37 = vrot.slane %v36, 2
  %v38 = vadd.f32 %v36, %v37
  %v39 = vrot.slane %v38, 1
  %v40 = vadd.f32 %v38, %v39
  %v41 = vlog2.pop %v40
  %v42 = vmul.f32 %v41, 0.6931472
  %v43 = vadd.f32 %v30, %v42
  %vm44 = vcmp.eq.s32.totalorder %v15, 1
  %v45 = vsel %vm44, %v43, 0.0
  %v46 = vrcp.pop %v40
  %v47 = vmul.f32 %v33, %v46
  %v48 = vsub.f32 %v31, %v42
  %v49 = vsub.f32 %v21, %v48
  %v50 = vmul.f32 %v47, %v49
  %v51 = vsel %vm23, %v50, 0.0
  %v52 = vrot.slane %v51, 4
  %v53 = vadd.f32 %v51, %v52
  %v54 = vrot.slane %v53, 2
  %v55 = vadd.f32 %v53, %v54
  %v56 = vrot.slane %v55, 1
  %v57 = vadd.f32 %v55, %v56
  %v58 = vsel %vm44, %v57, 0.0
  %59 = vst [vmem:[%s5 + $0x1] sm:$0x1] %v43
  %vm60 = vcmask 1040384
  %v61 = vsel %vm60, %v57, 0.0
  %v62 = vsel %vm60, %v43, 0.0
  %v64 = vrot.slane %v62, 4
  %v66 = vmul.f32 %v20, %v64
  %v67 = vadd.f32 %v17, %v66
  %vm68 = vcmask 1047556
  %v69 = vsel %vm68, %v67, -inf
  %v70 = vrot.slane %v69, 4
  %v71 = vmax.f32 %v69, %v70
  %v72 = vrot.slane %v71, 2
  %v73 = vmax.f32 %v71, %v72
  %v74 = vrot.slane %v73, 1
  %v75 = vmax.f32 %v73, %v74
  %v76 = vsub.f32 %v67, %v75
  %v77 = vmul.f32 %v76, 1.442695
  %v78 = vpow.pop %v77
  %v80 = vrot.slane %v78, 4
  %v82 = vsel %vm23, %v80, 0.0
  %v83 = vrot.slane %v82, 4
  %v84 = vadd.f32 %v82, %v83
  %v85 = vrot.slane %v84, 2
  %v86 = vadd.f32 %v84, %v85
  %v87 = vrot.slane %v86, 1
  %v88 = vadd.f32 %v86, %v87
  %v89 = vlog2.pop %v88
  %v90 = vmul.f32 %v89, 0.6931472
  %v91 = vadd.f32 %v75, %v90
  %vm92 = vcmp.eq.s32.totalorder %v15, 2
  %v93 = vsel %vm92, %v91, %v45
  %v94 = vrcp.pop %v88
  %v95 = vmul.f32 %v78, %v94
  %v96 = vsub.f32 %v76, %v90
  %v98 = vrot.slane %v61, 4
  %v100 = vmul.f32 %v20, %v98
  %v101 = vsub.f32 %v100, %v96
  %v102 = vmul.f32 %v95, %v101
  %v104 = vrot.slane %v102, 4
  %v106 = vsel %vm23, %v104, 0.0
  %v107 = vrot.slane %v106, 4
  %v108 = vadd.f32 %v106, %v107
  %v109 = vrot.slane %v108, 2
  %v110 = vadd.f32 %v108, %v109
  %v111 = vrot.slane %v110, 1
  %v112 = vadd.f32 %v110, %v111
  %v113 = vsel %vm92, %v112, %v58
  %114 = vst [vmem:[%s5 + $0x2] sm:$0x1] %v91
  %v115 = vrot.slane %v61, 7
  %v117 = vsel %vm60, %v112, %v115
  %v118 = vrot.slane %v62, 7
  %v120 = vsel %vm60, %v91, %v118
  %v121 = vsel %vm23, %v22, %v67
  %122 = vst [vmem:[%s4] sm:$0xff] %v121
  %v123 = vld [vmem:[%s0 + $0x8] sm:$0xff]
  %vm124 = vcmp.gt.f32.partialorder %v123, -5e+08
  %v125 = vsel %vm124, 1, 0
  %v126 = vcvt.s32.f32 %v125
  %v127 = vmul.f32 %v126, %v120
  %v128 = vadd.f32 %v123, %v127
  %v129 = vsel %vm23, %v128, -inf
  %v130 = vrot.slane %v129, 4
  %v131 = vmax.f32 %v129, %v130
  %v132 = vrot.slane %v131, 2
  %v133 = vmax.f32 %v131, %v132
  %v134 = vrot.slane %v133, 1
  %v135 = vmax.f32 %v133, %v134
  %v136 = vsub.f32 %v128, %v135
  %v137 = vmul.f32 %v136, 1.442695
  %v138 = vpow.pop %v137
  %v139 = vsel %vm23, %v138, 0.0
  %v140 = vrot.slane %v139, 4
  %v141 = vadd.f32 %v139, %v140
  %v142 = vrot.slane %v141, 2
  %v143 = vadd.f32 %v141, %v142
  %v144 = vrot.slane %v143, 1
  %v145 = vadd.f32 %v143, %v144
  %v146 = vlog2.pop %v145
  %v147 = vmul.f32 %v146, 0.6931472
  %v148 = vadd.f32 %v135, %v147
  %vm149 = vcmp.eq.s32.totalorder %v15, 3
  %v150 = vsel %vm149, %v148, %v93
  %v151 = vrcp.pop %v145
  %v152 = vmul.f32 %v138, %v151
  %v153 = vsub.f32 %v136, %v147
  %v154 = vmul.f32 %v126, %v117
  %v155 = vsub.f32 %v154, %v153
  %v156 = vmul.f32 %v152, %v155
  %v157 = vsel %vm23, %v156, 0.0
  %v158 = vrot.slane %v157, 4
  %v159 = vadd.f32 %v157, %v158
  %v160 = vrot.slane %v159, 2
  %v161 = vadd.f32 %v159, %v160
  %v162 = vrot.slane %v161, 1
  %v163 = vadd.f32 %v161, %v162
  %v164 = vsel %vm149, %v163, %v113
  %165 = vst [vmem:[%s5 + $0x3] sm:$0x1] %v148
  %v167 = vrot.slane %v117, 7
  %v169 = vsel %vm60, %v163, %v167
  %v171 = vrot.slane %v120, 7
  %v173 = vsel %vm60, %v148, %v171
  %v175 = vrot.slane %v173, 4
  %v177 = vmul.f32 %v126, %v175
  %v178 = vadd.f32 %v123, %v177
  %v179 = vsel %vm68, %v178, -inf
  %v180 = vrot.slane %v179, 4
  %v181 = vmax.f32 %v179, %v180
  %v182 = vrot.slane %v181, 2
  %v183 = vmax.f32 %v181, %v182
  %v184 = vrot.slane %v183, 1
  %v185 = vmax.f32 %v183, %v184
  %v186 = vsub.f32 %v178, %v185
  %v187 = vmul.f32 %v186, 1.442695
  %v188 = vpow.pop %v187
  %v190 = vrot.slane %v188, 4
  %v192 = vsel %vm23, %v190, 0.0
  %v193 = vrot.slane %v192, 4
  %v194 = vadd.f32 %v192, %v193
  %v195 = vrot.slane %v194, 2
  %v196 = vadd.f32 %v194, %v195
  %v197 = vrot.slane %v196, 1
  %v198 = vadd.f32 %v196, %v197
  %v199 = vlog2.pop %v198
  %v200 = vmul.f32 %v199, 0.6931472
  %v201 = vadd.f32 %v185, %v200
  %vm202 = vcmp.eq.s32.totalorder %v15, 4
  %v203 = vsel %vm202, %v201, %v150
  %v204 = vrcp.pop %v198
  %v205 = vmul.f32 %v188, %v204
  %v206 = vsub.f32 %v186, %v200
  %v208 = vrot.slane %v169, 4
  %v210 = vmul.f32 %v126, %v208
  %v211 = vsub.f32 %v210, %v206
  %v212 = vmul.f32 %v205, %v211
  %v214 = vrot.slane %v212, 4
  %v216 = vsel %vm23, %v214, 0.0
  %v217 = vrot.slane %v216, 4
  %v218 = vadd.f32 %v216, %v217
  %v219 = vrot.slane %v218, 2
  %v220 = vadd.f32 %v218, %v219
  %v221 = vrot.slane %v220, 1
  %v222 = vadd.f32 %v220, %v221
  %v223 = vsel %vm202, %v222, %v164
  %224 = vst [vmem:[%s5 + $0x4] sm:$0x1] %v201
  %v225 = vrot.slane %v169, 7
  %v227 = vsel %vm60, %v222, %v225
  %v228 = vrot.slane %v173, 7
  %v230 = vsel %vm60, %v201, %v228
  %v231 = vsel %vm23, %v128, %v178
  %232 = vst [vmem:[%s4 + $0x8] sm:$0xff] %v231
  %v233 = vld [vmem:[%s0 + $0x10] sm:$0xff]
  %vm234 = vcmp.gt.f32.partialorder %v233, -5e+08
  %v235 = vsel %vm234, 1, 0
  %v236 = vcvt.s32.f32 %v235
  %v237 = vmul.f32 %v236, %v230
  %v238 = vadd.f32 %v233, %v237
  %v239 = vsel %vm23, %v238, -inf
  %v240 = vrot.slane %v239, 4
  %v241 = vmax.f32 %v239, %v240
  %v242 = vrot.slane %v241, 2
  %v243 = vmax.f32 %v241, %v242
  %v244 = vrot.slane %v243, 1
  %v245 = vmax.f32 %v243, %v244
  %v246 = vsub.f32 %v238, %v245
  %v247 = vmul.f32 %v246, 1.442695
  %v248 = vpow.pop %v247
  %v249 = vsel %vm23, %v248, 0.0
  %v250 = vrot.slane %v249, 4
  %v251 = vadd.f32 %v249, %v250
  %v252 = vrot.slane %v251, 2
  %v253 = vadd.f32 %v251, %v252
  %v254 = vrot.slane %v253, 1
  %v255 = vadd.f32 %v253, %v254
  %v256 = vlog2.pop %v255
  %v257 = vmul.f32 %v256, 0.6931472
  %v258 = vadd.f32 %v245, %v257
  %vm259 = vcmp.eq.s32.totalorder %v15, 5
  %v260 = vsel %vm259, %v258, %v203
  %v261 = vrcp.pop %v255
  %v262 = vmul.f32 %v248, %v261
  %v263 = vsub.f32 %v246, %v257
  %v264 = vmul.f32 %v236, %v227
  %v265 = vsub.f32 %v264, %v263
  %v266 = vmul.f32 %v262, %v265
  %v267 = vsel %vm23, %v266, 0.0
  %v268 = vrot.slane %v267, 4
  %v269 = vadd.f32 %v267, %v268
  %v270 = vrot.slane %v269, 2
  %v271 = vadd.f32 %v269, %v270
  %v272 = vrot.slane %v271, 1
  %v273 = vadd.f32 %v271, %v272
  %v274 = vsel %vm259, %v273, %v223
  %275 = vst [vmem:[%s5 + $0x5] sm:$0x1] %v258
  %v277 = vrot.slane %v227, 7
  %v279 = vsel %vm60, %v273, %v277
  %v281 = vrot.slane %v230, 7
  %v283 = vsel %vm60, %v258, %v281
  %v285 = vrot.slane %v283, 4
  %v287 = vmul.f32 %v236, %v285
  %v288 = vadd.f32 %v233, %v287
  %v289 = vsel %vm68, %v288, -inf
  %v290 = vrot.slane %v289, 4
  %v291 = vmax.f32 %v289, %v290
  %v292 = vrot.slane %v291, 2
  %v293 = vmax.f32 %v291, %v292
  %v294 = vrot.slane %v293, 1
  %v295 = vmax.f32 %v293, %v294
  %v296 = vsub.f32 %v288, %v295
  %v297 = vmul.f32 %v296, 1.442695
  %v298 = vpow.pop %v297
  %v300 = vrot.slane %v298, 4
  %v302 = vsel %vm23, %v300, 0.0
  %v303 = vrot.slane %v302, 4
  %v304 = vadd.f32 %v302, %v303
  %v305 = vrot.slane %v304, 2
  %v306 = vadd.f32 %v304, %v305
  %v307 = vrot.slane %v306, 1
  %v308 = vadd.f32 %v306, %v307
  %v309 = vlog2.pop %v308
  %v310 = vmul.f32 %v309, 0.6931472
  %v311 = vadd.f32 %v295, %v310
  %vm312 = vcmp.eq.s32.totalorder %v15, 6
  %v313 = vsel %vm312, %v311, %v260
  %v314 = vrcp.pop %v308
  %v315 = vmul.f32 %v298, %v314
  %v316 = vsub.f32 %v296, %v310
  %v318 = vrot.slane %v279, 4
  %v320 = vmul.f32 %v236, %v318
  %v321 = vsub.f32 %v320, %v316
  %v322 = vmul.f32 %v315, %v321
  %v324 = vrot.slane %v322, 4
  %v326 = vsel %vm23, %v324, 0.0
  %v327 = vrot.slane %v326, 4
  %v328 = vadd.f32 %v326, %v327
  %v329 = vrot.slane %v328, 2
  %v330 = vadd.f32 %v328, %v329
  %v331 = vrot.slane %v330, 1
  %v332 = vadd.f32 %v330, %v331
  %v333 = vsel %vm312, %v332, %v274
  %334 = vst [vmem:[%s5 + $0x6] sm:$0x1] %v311
  %v335 = vrot.slane %v279, 7
  %v337 = vsel %vm60, %v332, %v335
  %v338 = vrot.slane %v283, 7
  %v340 = vsel %vm60, %v311, %v338
  %v341 = vsel %vm23, %v238, %v288
  %342 = vst [vmem:[%s4 + $0x10] sm:$0xff] %v341
  %v343 = vld [vmem:[%s0 + $0x18] sm:$0xff]
  %vm344 = vcmp.gt.f32.partialorder %v343, -5e+08
  %v345 = vsel %vm344, 1, 0
  %v346 = vcvt.s32.f32 %v345
  %v347 = vmul.f32 %v346, %v340
  %v348 = vadd.f32 %v343, %v347
  %v349 = vsel %vm23, %v348, -inf
  %v350 = vrot.slane %v349, 4
  %v351 = vmax.f32 %v349, %v350
  %v352 = vrot.slane %v351, 2
  %v353 = vmax.f32 %v351, %v352
  %v354 = vrot.slane %v353, 1
  %v355 = vmax.f32 %v353, %v354
  %v356 = vsub.f32 %v348, %v355
  %v357 = vmul.f32 %v356, 1.442695
  %v358 = vpow.pop %v357
  %v359 = vsel %vm23, %v358, 0.0
  %v360 = vrot.slane %v359, 4
  %v361 = vadd.f32 %v359, %v360
  %v362 = vrot.slane %v361, 2
  %v363 = vadd.f32 %v361, %v362
  %v364 = vrot.slane %v363, 1
  %v365 = vadd.f32 %v363, %v364
  %v366 = vlog2.pop %v365
  %v367 = vmul.f32 %v366, 0.6931472
  %v368 = vadd.f32 %v355, %v367
  %vm369 = vcmp.eq.s32.totalorder %v15, 7
  %v370 = vsel %vm369, %v368, %v313
  %v371 = vrcp.pop %v365
  %v372 = vmul.f32 %v358, %v371
  %v373 = vsub.f32 %v356, %v367
  %v374 = vmul.f32 %v346, %v337
  %v375 = vsub.f32 %v374, %v373
  %v376 = vmul.f32 %v372, %v375
  %v377 = vsel %vm23, %v376, 0.0
  %v378 = vrot.slane %v377, 4
  %v379 = vadd.f32 %v377, %v378
  %v380 = vrot.slane %v379, 2
  %v381 = vadd.f32 %v379, %v380
  %v382 = vrot.slane %v381, 1
  %v383 = vadd.f32 %v381, %v382
  %v384 = vsel %vm369, %v383, %v333
  %385 = vst [vmem:[%s5 + $0x7] sm:$0x1] %v368
  %v387 = vrot.slane %v337, 7
  %v389 = vsel %vm60, %v383, %v387
  %v391 = vrot.slane %v340, 7
  %v393 = vsel %vm60, %v368, %v391
  %v395 = vrot.slane %v393, 4
  %v397 = vmul.f32 %v346, %v395
  %v398 = vadd.f32 %v343, %v397
  %v399 = vsel %vm68, %v398, -inf
  %v400 = vrot.slane %v399, 4
  %v401 = vmax.f32 %v399, %v400
  %v402 = vrot.slane %v401, 2
  %v403 = vmax.f32 %v401, %v402
  %v404 = vrot.slane %v403, 1
  %v405 = vmax.f32 %v403, %v404
  %v406 = vsub.f32 %v398, %v405
  %v407 = vmul.f32 %v406, 1.442695
  %v408 = vpow.pop %v407
  %v410 = vrot.slane %v408, 4
  %v412 = vsel %vm23, %v410, 0.0
  %v413 = vrot.slane %v412, 4
  %v414 = vadd.f32 %v412, %v413
  %v415 = vrot.slane %v414, 2
  %v416 = vadd.f32 %v414, %v415
  %v417 = vrot.slane %v416, 1
  %v418 = vadd.f32 %v416, %v417
  %v419 = vlog2.pop %v418
  %v420 = vmul.f32 %v419, 0.6931472
  %v421 = vadd.f32 %v405, %v420
  %vm422 = vcmp.eq.s32.totalorder %v15, 8
  %v423 = vsel %vm422, %v421, %v370
  %v424 = vrcp.pop %v418
  %v425 = vmul.f32 %v408, %v424
  %v426 = vsub.f32 %v406, %v420
  %v428 = vrot.slane %v389, 4
  %v430 = vmul.f32 %v346, %v428
  %v431 = vsub.f32 %v430, %v426
  %v432 = vmul.f32 %v425, %v431
  %v434 = vrot.slane %v432, 4
  %v436 = vsel %vm23, %v434, 0.0
  %v437 = vrot.slane %v436, 4
  %v438 = vadd.f32 %v436, %v437
  %v439 = vrot.slane %v438, 2
  %v440 = vadd.f32 %v438, %v439
  %v441 = vrot.slane %v440, 1
  %v442 = vadd.f32 %v440, %v441
  %v443 = vsel %vm422, %v442, %v384
  %444 = vst [vmem:[%s5 + $0x8] sm:$0x1] %v421
  %v445 = vsel %vm23, %v348, %v398
  %446 = vst [vmem:[%s4 + $0x18] sm:$0xff] %v445
  %447 = vst [vmem:[%s2] sm:$0x1] %v423
  %448 = vst [vmem:[%s3] sm:$0x1] %v443
  // Predicated region
  $region10: #{forward.2} parent=0 // pred_check
    _
  $region11: #{forward.2} parent=0 // pred_check_branch
    %450 = sbr.rel (0) target = $region13
  $region12: #{forward.2} parent=0 // pred_region
    _
  $region13: #{forward.2} parent=0 // pred_fallthru
    _
  // Predicated region
  $region14: #{forward.2} parent=0 // pred_check
    _
  $region15: #{forward.2} parent=0 // pred_check_branch
    %452 = sbr.rel (0) target = $region17
  $region16: #{forward.2} parent=0 // pred_region
    _
  $region17: #{forward.2} parent=0 // pred_fallthru
    _
  // Predicated region
  $region18: #{forward.2} parent=0 // pred_check
    _
  $region19: #{forward.2} parent=0 // pred_check_branch
    %454 = sbr.rel (0) target = $region21
  $region20: #{forward.2} parent=0 // pred_region
    _
  $region21: #{forward.2} parent=0 // pred_fallthru
    _
  // Predicated region
  $region22: #{forward.2} parent=0 // pred_check
    _
  $region23: #{forward.2} parent=0 // pred_check_branch
    %456 = sbr.rel (0) target = $region25
  $region24: #{forward.2} parent=0 // pred_region
    _
  $region25: #{forward.2} parent=0 // pred_fallthru
    _
  // Predicated region
  $region26: #{forward.2} parent=0 // pred_check
    _
  $region27: #{forward.2} parent=0 // pred_check_branch
    %458 = sbr.rel (0) target = $region29
  $region28: #{forward.2} parent=0 // pred_region
    _
  $region29: #{forward.2} parent=0 // pred_fallthru
    _
  // Predicated region
  $region30: #{forward.2} parent=0 // pred_check
    _
  $region31: #{forward.2} parent=0 // pred_check_branch
    %460 = sbr.rel (0) target = $region33
  $region32: #{forward.2} parent=0 // pred_region
    _
  $region33: #{forward.2} parent=0 // pred_fallthru
    _
  // Predicated region
  $region34: #{forward.2} parent=0 // pred_check
    _
  $region35: #{forward.2} parent=0 // pred_check_branch
    %462 = sbr.rel (0) target = $region37
  $region36: #{forward.2} parent=0 // pred_region
    _
  $region37: #{forward.2} parent=0 // pred_fallthru
    _
  // Predicated region
  $region38: #{forward.2} parent=0 // pred_check
    _
  $region39: #{forward.2} parent=0 // pred_check_branch
    %464 = sbr.rel (0) target = $region41
  $region40: #{forward.2} parent=0 // pred_region
    _
  $region41: #{forward.2} parent=0 // pred_fallthru
    _

// kernel: forward.3
$region0: #{forward.3}
  #allocation0 [shape = 'u32[]', space=smem, size = 0x4, offset = 0x4, fixed_abs, tag = 'smem constant byte address 0x4 - core index']
  #allocation1 [shape = 'u32[144,128]{1,0:T(1,128)}', space=vmem, size = 0x12000, scoped, tag = 'internal scratch']
  %s0 = inlined_call_operand.vmem [shape: f32[32,128], index: 0, kind: input, shape index: {}]
  %s1 = inlined_call_operand.vmem [shape: s32[1,128], index: 1, kind: input, shape index: {}]
  %s2 = inlined_call_operand.vmem [shape: f32[1,128], index: 2, kind: output, shape index: {0}]
  %s3 = inlined_call_operand.vmem [shape: f32[32,128], index: 3, kind: output, shape index: {1}]
  %4 = xla_tuple %s2, %s3
  %s5 = sld [smem:[#allocation0]]
  $region26: #{forward.3} parent=0
    _
  %s7 = ssub.s32 1, %s5
  %s8 = scalar_select 0, %s7, %s5
  // Predicated region
  $region2: #{forward.3} parent=0 // pred_check
    _
  $region3: #{forward.3} parent=0 // pred_check_branch
    %10 = sbr.rel (0) target = $region5
  $region4: #{forward.3} parent=0 // pred_region
    _
  $region5: #{forward.3} parent=0 // pred_fallthru
    _
  // Predicated region
  $region6: #{forward.3} parent=0 // pred_check
    _
  $region7: #{forward.3} parent=0 // pred_check_branch
    %12 = sbr.rel (0) target = $region9
  $region8: #{forward.3} parent=0 // pred_region
    _
  $region9: #{forward.3} parent=0 // pred_fallthru
    _
  %v13 = vld [vmem:[%s1] sm:$0x1]
  %v14 = vld [vmem:[%s0] sm:$0xff]
  %vm15 = vcmp.gt.f32.partialorder %v14, -5e+08
  %v16 = vsel %vm15, 1, 0
  %v17 = vcvt.s32.f32 %v16
  %v18 = vmul.f32 %v17, 0.0
  %v19 = vadd.f32 %v14, %v18
  %vm20 = vcmask 1043456
  %v21 = vsel %vm20, %v19, -inf
  %v22 = vrot.slane %v21, 4
  %v23 = vmax.f32 %v21, %v22
  %v24 = vrot.slane %v23, 2
  %v25 = vmax.f32 %v23, %v24
  %v26 = vrot.slane %v25, 1
  %v27 = vmax.f32 %v25, %v26
  %v28 = vsub.f32 %v19, %v27
  %v29 = vmul.f32 %v28, 1.442695
  %v30 = vpow.pop %v29
  %v31 = vsel %vm20, %v30, 0.0
  %v32 = vrot.slane %v31, 4
  %v33 = vadd.f32 %v31, %v32
  %v34 = vrot.slane %v33, 2
  %v35 = vadd.f32 %v33, %v34
  %v36 = vrot.slane %v35, 1
  %v37 = vadd.f32 %v35, %v36
  %v38 = vlog2.pop %v37
  %v39 = vmul.f32 %v38, 0.6931472
  %v40 = vadd.f32 %v27, %v39
  %vm41 = vcmp.eq.s32.totalorder %v13, 1
  %v42 = vsel %vm41, %v40, 0.0
  %vm43 = vcmask 1040384
  %v44 = vsel %vm43, %v40, 0.0
  %v46 = vrot.slane %v44, 4
  %v48 = vmul.f32 %v17, %v46
  %v49 = vadd.f32 %v14, %v48
  %vm50 = vcmask 1047556
  %v51 = vsel %vm50, %v49, -inf
  %v52 = vrot.slane %v51, 4
  %v53 = vmax.f32 %v51, %v52
  %v54 = vrot.slane %v53, 2
  %v55 = vmax.f32 %v53, %v54
  %v56 = vrot.slane %v55, 1
  %v57 = vmax.f32 %v55, %v56
  %v58 = vsub.f32 %v49, %v57
  %v59 = vmul.f32 %v58, 1.442695
  %v60 = vpow.pop %v59
  %v62 = vrot.slane %v60, 4
  %v64 = vsel %vm20, %v62, 0.0
  %v65 = vrot.slane %v64, 4
  %v66 = vadd.f32 %v64, %v65
  %v67 = vrot.slane %v66, 2
  %v68 = vadd.f32 %v66, %v67
  %v69 = vrot.slane %v68, 1
  %v70 = vadd.f32 %v68, %v69
  %v71 = vlog2.pop %v70
  %v72 = vmul.f32 %v71, 0.6931472
  %v73 = vadd.f32 %v57, %v72
  %vm74 = vcmp.eq.s32.totalorder %v13, 2
  %v75 = vsel %vm74, %v73, %v42
  %v76 = vrot.slane %v44, 7
  %v78 = vsel %vm43, %v73, %v76
  %v79 = vsel %vm20, %v19, %v49
  %80 = vst [vmem:[%s3] sm:$0xff] %v79
  %v81 = vld [vmem:[%s0 + $0x8] sm:$0xff]
  %vm82 = vcmp.gt.f32.partialorder %v81, -5e+08
  %v83 = vsel %vm82, 1, 0
  %v84 = vcvt.s32.f32 %v83
  %v85 = vmul.f32 %v84, %v78
  %v86 = vadd.f32 %v81, %v85
  %v87 = vsel %vm20, %v86, -inf
  %v88 = vrot.slane %v87, 4
  %v89 = vmax.f32 %v87, %v88
  %v90 = vrot.slane %v89, 2
  %v91 = vmax.f32 %v89, %v90
  %v92 = vrot.slane %v91, 1
  %v93 = vmax.f32 %v91, %v92
  %v94 = vsub.f32 %v86, %v93
  %v95 = vmul.f32 %v94, 1.442695
  %v96 = vpow.pop %v95
  %v97 = vsel %vm20, %v96, 0.0
  %v98 = vrot.slane %v97, 4
  %v99 = vadd.f32 %v97, %v98
  %v100 = vrot.slane %v99, 2
  %v101 = vadd.f32 %v99, %v100
  %v102 = vrot.slane %v101, 1
  %v103 = vadd.f32 %v101, %v102
  %v104 = vlog2.pop %v103
  %v105 = vmul.f32 %v104, 0.6931472
  %v106 = vadd.f32 %v93, %v105
  %vm107 = vcmp.eq.s32.totalorder %v13, 3
  %v108 = vsel %vm107, %v106, %v75
  %v110 = vrot.slane %v78, 7
  %v112 = vsel %vm43, %v106, %v110
  %v114 = vrot.slane %v112, 4
  %v116 = vmul.f32 %v84, %v114
  %v117 = vadd.f32 %v81, %v116
  %v118 = vsel %vm50, %v117, -inf
  %v119 = vrot.slane %v118, 4
  %v120 = vmax.f32 %v118, %v119
  %v121 = vrot.slane %v120, 2
  %v122 = vmax.f32 %v120, %v121
  %v123 = vrot.slane %v122, 1
  %v124 = vmax.f32 %v122, %v123
  %v125 = vsub.f32 %v117, %v124
  %v126 = vmul.f32 %v125, 1.442695
  %v127 = vpow.pop %v126
  %v129 = vrot.slane %v127, 4
  %v131 = vsel %vm20, %v129, 0.0
  %v132 = vrot.slane %v131, 4
  %v133 = vadd.f32 %v131, %v132
  %v134 = vrot.slane %v133, 2
  %v135 = vadd.f32 %v133, %v134
  %v136 = vrot.slane %v135, 1
  %v137 = vadd.f32 %v135, %v136
  %v138 = vlog2.pop %v137
  %v139 = vmul.f32 %v138, 0.6931472
  %v140 = vadd.f32 %v124, %v139
  %vm141 = vcmp.eq.s32.totalorder %v13, 4
  %v142 = vsel %vm141, %v140, %v108
  %v143 = vrot.slane %v112, 7
  %v145 = vsel %vm43, %v140, %v143
  %v146 = vsel %vm20, %v86, %v117
  %147 = vst [vmem:[%s3 + $0x8] sm:$0xff] %v146
  %v148 = vld [vmem:[%s0 + $0x10] sm:$0xff]
  %vm149 = vcmp.gt.f32.partialorder %v148, -5e+08
  %v150 = vsel %vm149, 1, 0
  %v151 = vcvt.s32.f32 %v150
  %v152 = vmul.f32 %v151, %v145
  %v153 = vadd.f32 %v148, %v152
  %v154 = vsel %vm20, %v153, -inf
  %v155 = vrot.slane %v154, 4
  %v156 = vmax.f32 %v154, %v155
  %v157 = vrot.slane %v156, 2
  %v158 = vmax.f32 %v156, %v157
  %v159 = vrot.slane %v158, 1
  %v160 = vmax.f32 %v158, %v159
  %v161 = vsub.f32 %v153, %v160
  %v162 = vmul.f32 %v161, 1.442695
  %v163 = vpow.pop %v162
  %v164 = vsel %vm20, %v163, 0.0
  %v165 = vrot.slane %v164, 4
  %v166 = vadd.f32 %v164, %v165
  %v167 = vrot.slane %v166, 2
  %v168 = vadd.f32 %v166, %v167
  %v169 = vrot.slane %v168, 1
  %v170 = vadd.f32 %v168, %v169
  %v171 = vlog2.pop %v170
  %v172 = vmul.f32 %v171, 0.6931472
  %v173 = vadd.f32 %v160, %v172
  %vm174 = vcmp.eq.s32.totalorder %v13, 5
  %v175 = vsel %vm174, %v173, %v142
  %v177 = vrot.slane %v145, 7
  %v179 = vsel %vm43, %v173, %v177
  %v181 = vrot.slane %v179, 4
  %v183 = vmul.f32 %v151, %v181
  %v184 = vadd.f32 %v148, %v183
  %v185 = vsel %vm50, %v184, -inf
  %v186 = vrot.slane %v185, 4
  %v187 = vmax.f32 %v185, %v186
  %v188 = vrot.slane %v187, 2
  %v189 = vmax.f32 %v187, %v188
  %v190 = vrot.slane %v189, 1
  %v191 = vmax.f32 %v189, %v190
  %v192 = vsub.f32 %v184, %v191
  %v193 = vmul.f32 %v192, 1.442695
  %v194 = vpow.pop %v193
  %v196 = vrot.slane %v194, 4
  %v198 = vsel %vm20, %v196, 0.0
  %v199 = vrot.slane %v198, 4
  %v200 = vadd.f32 %v198, %v199
  %v201 = vrot.slane %v200, 2
  %v202 = vadd.f32 %v200, %v201
  %v203 = vrot.slane %v202, 1
  %v204 = vadd.f32 %v202, %v203
  %v205 = vlog2.pop %v204
  %v206 = vmul.f32 %v205, 0.6931472
  %v207 = vadd.f32 %v191, %v206
  %vm208 = vcmp.eq.s32.totalorder %v13, 6
  %v209 = vsel %vm208, %v207, %v175
  %v210 = vrot.slane %v179, 7
  %v212 = vsel %vm43, %v207, %v210
  %v213 = vsel %vm20, %v153, %v184
  %214 = vst [vmem:[%s3 + $0x10] sm:$0xff] %v213
  %v215 = vld [vmem:[%s0 + $0x18] sm:$0xff]
  %vm216 = vcmp.gt.f32.partialorder %v215, -5e+08
  %v217 = vsel %vm216, 1, 0
  %v218 = vcvt.s32.f32 %v217
  %v219 = vmul.f32 %v218, %v212
  %v220 = vadd.f32 %v215, %v219
  %v221 = vsel %vm20, %v220, -inf
  %v222 = vrot.slane %v221, 4
  %v223 = vmax.f32 %v221, %v222
  %v224 = vrot.slane %v223, 2
  %v225 = vmax.f32 %v223, %v224
  %v226 = vrot.slane %v225, 1
  %v227 = vmax.f32 %v225, %v226
  %v228 = vsub.f32 %v220, %v227
  %v229 = vmul.f32 %v228, 1.442695
  %v230 = vpow.pop %v229
  %v231 = vsel %vm20, %v230, 0.0
  %v232 = vrot.slane %v231, 4
  %v233 = vadd.f32 %v231, %v232
  %v234 = vrot.slane %v233, 2
  %v235 = vadd.f32 %v233, %v234
  %v236 = vrot.slane %v235, 1
  %v237 = vadd.f32 %v235, %v236
  %v238 = vlog2.pop %v237
  %v239 = vmul.f32 %v238, 0.6931472
  %v240 = vadd.f32 %v227, %v239
  %vm241 = vcmp.eq.s32.totalorder %v13, 7
  %v242 = vsel %vm241, %v240, %v209
  %v244 = vrot.slane %v212, 7
  %v246 = vsel %vm43, %v240, %v244
  %v248 = vrot.slane %v246, 4
  %v250 = vmul.f32 %v218, %v248
  %v251 = vadd.f32 %v215, %v250
  %v252 = vsel %vm50, %v251, -inf
  %v253 = vrot.slane %v252, 4
  %v254 = vmax.f32 %v252, %v253
  %v255 = vrot.slane %v254, 2
  %v256 = vmax.f32 %v254, %v255
  %v257 = vrot.slane %v256, 1
  %v258 = vmax.f32 %v256, %v257
  %v259 = vsub.f32 %v251, %v258
  %v260 = vmul.f32 %v259, 1.442695
  %v261 = vpow.pop %v260
  %v263 = vrot.slane %v261, 4
  %v265 = vsel %vm20, %v263, 0.0
  %v266 = vrot.slane %v265, 4
  %v267 = vadd.f32 %v265, %v266
  %v268 = vrot.slane %v267, 2
  %v269 = vadd.f32 %v267, %v268
  %v270 = vrot.slane %v269, 1
  %v271 = vadd.f32 %v269, %v270
  %v272 = vlog2.pop %v271
  %v273 = vmul.f32 %v272, 0.6931472
  %v274 = vadd.f32 %v258, %v273
  %vm275 = vcmp.eq.s32.totalorder %v13, 8
  %v276 = vsel %vm275, %v274, %v242
  %v277 = vsel %vm20, %v220, %v251
  %278 = vst [vmem:[%s3 + $0x18] sm:$0xff] %v277
  %279 = vst [vmem:[%s2] sm:$0x1] %v276
  // Predicated region
  $region10: #{forward.3} parent=0 // pred_check
    _
  $region11: #{forward.3} parent=0 // pred_check_branch
    %281 = sbr.rel (0) target = $region13
  $region12: #{forward.3} parent=0 // pred_region
    _
  $region13: #{forward.3} parent=0 // pred_fallthru
    _
  // Predicated region
  $region14: #{forward.3} parent=0 // pred_check
    _
  $region15: #{forward.3} parent=0 // pred_check_branch
    %283 = sbr.rel (0) target = $region17
  $region16: #{forward.3} parent=0 // pred_region
    _
  $region17: #{forward.3} parent=0 // pred_fallthru
    _
  // Predicated region
  $region18: #{forward.3} parent=0 // pred_check
    _
  $region19: #{forward.3} parent=0 // pred_check_branch
    %285 = sbr.rel (0) target = $region21
  $region20: #{forward.3} parent=0 // pred_region
    _
  $region21: #{forward.3} parent=0 // pred_fallthru
    _
  // Predicated region
  $region22: #{forward.3} parent=0 // pred_check
    _
  $region23: #{forward.3} parent=0 // pred_check_branch
    %287 = sbr.rel (0) target = $region25
  $region24: #{forward.3} parent=0 // pred_region
    _
  $region25: #{forward.3} parent=0 // pred_fallthru
    _

// kernel: squeeze.3
$region0: #{squeeze.3}
  %s0 = inlined_call_operand.vmem [shape: f32[64], index: 0, kind: input, shape index: {}]
  %s1 = inlined_call_operand.hbm [shape: f32[8,8], index: 1, kind: output, shape index: {}]
  $region1: #{squeeze.3} parent=0
    #allocation0 [shape = 'u8[4096]{0}', space=vmem, size = 0x1000, scoped, tag = 'operand span for operand 1']
    #allocation1 [shape = 's32[1]{0}', space=sflag, size = 0x4, scoped, tag = 'scoped memory for squeeze.3']
    #allocation2 [shape = 'u8[4096]{0}', space=vmem, size = 0x1000, scoped, tag = 'scoped mem for input reshape']
    %2 = vsyncpa [#allocation1], 0
    %s4 = sshll.u32 1, 1
    %s5 = ssub.s32 %s4, 1
    %v6 = vld [vmem:[%s0] sm:%s5]
    %7 = vst [vmem:[#allocation2] sm:%s5] %v6
    %v8 = vld [vmem:[#allocation2] sm:$0x1]
    %vm9 = vcmask 64512
    %10 = vst.msk [vmem:[#allocation0] sm:$0x1] %vm9, %v8
    %v11 = vld [vmem:[#allocation2] sm:$0x1]
    %12 = vrot.lane.b32.xlu0 %v11, 120
    %v13 = vpop.permute.xlu0 %12
    %vm14 = vcmask 64512
    %s15 = scalar_lea.vmem [#allocation0], 1
    %16 = vst.msk [vmem:[%s15] sm:$0x1] %vm14, %v13
    %v17 = vld [vmem:[#allocation2] sm:$0x1]
    %18 = vrot.lane.b32.xlu0 %v17, 112
    %v19 = vpop.permute.xlu0 %18
    %vm20 = vcmask 64512
    %s21 = scalar_lea.vmem [#allocation0], 2
    %22 = vst.msk [vmem:[%s21] sm:$0x1] %vm20, %v19
    %v23 = vld [vmem:[#allocation2] sm:$0x1]
    %24 = vrot.lane.b32.xlu0 %v23, 104
    %v25 = vpop.permute.xlu0 %24
    %vm26 = vcmask 64512
    %s27 = scalar_lea.vmem [#allocation0], 3
    %28 = vst.msk [vmem:[%s27] sm:$0x1] %vm26, %v25
    %v29 = vld [vmem:[#allocation2] sm:$0x1]
    %30 = vrot.lane.b32.xlu0 %v29, 96
    %v31 = vpop.permute.xlu0 %30
    %vm32 = vcmask 64512
    %s33 = scalar_lea.vmem [#allocation0], 4
    %34 = vst.msk [vmem:[%s33] sm:$0x1] %vm32, %v31
    %v35 = vld [vmem:[#allocation2] sm:$0x1]
    %36 = vrot.lane.b32.xlu0 %v35, 88
    %v37 = vpop.permute.xlu0 %36
    %vm38 = vcmask 64512
    %s39 = scalar_lea.vmem [#allocation0], 5
    %40 = vst.msk [vmem:[%s39] sm:$0x1] %vm38, %v37
    %v41 = vld [vmem:[#allocation2] sm:$0x1]
    %42 = vrot.lane.b32.xlu0 %v41, 80
    %v43 = vpop.permute.xlu0 %42
    %vm44 = vcmask 64512
    %s45 = scalar_lea.vmem [#allocation0], 6
    %46 = vst.msk [vmem:[%s45] sm:$0x1] %vm44, %v43
    %v47 = vld [vmem:[#allocation2] sm:$0x1]
    %48 = vrot.lane.b32.xlu0 %v47, 72
    %v49 = vpop.permute.xlu0 %48
    %vm50 = vcmask 64512
    %s51 = scalar_lea.vmem [#allocation0], 7
    %52 = vst.msk [vmem:[%s51] sm:$0x1] %vm50, %v49
    %s54 = ssub.s32 128, 128
    %55 = vsyncadd [#allocation1], %s54
    %s57 = sshll.u32 [#allocation0], 4
    %s58 = int_to_ptr.vmem [resolvable:$true] %s57
    %60 = dma.vmem_to_hbm [thread:$0]  %s58, 128, %s1, [#allocation1]
    %61 = dma.done [#allocation1], 128
    %62 = vsyncpa [#allocation1], 1

</llo_original>
